<compile_context>
chip_gen: v5e
topology: v5e:2x2
jax: 0.10.0
libtpu: 0.0.40
codegen_flags: <defaults>
</compile_context>

<pallas_src>
import functools

import jax
import jax.numpy as jnp
from jax.experimental import pallas as pl
from jax.experimental.pallas import tpu as pltpu


# ---------------------------------------------------------------------------
# Fused Pallas kernel: all LSTM layers + final FC in one call.
# ---------------------------------------------------------------------------
def _lstm_fused_kernel(T, Bp, H, num_layers, *refs):
    """refs layout:
         refs[0]                       : x      (T*Bp, Din)  time-major, bf16
         refs[1+3l .. 3+3l]            : wih_l (Din_l,4H) bf16, whh_l (H,4H) bf16,
                                         b_l (1,4H) f32    for l = 0..L-1
         refs[1+3L], refs[2+3L]        : fc_w (H, Op) bf16, fc_b (1, Op) f32
         refs[3+3L]                    : out   (Bp, Op) f32
    """
    bf16 = jnp.bfloat16
    f32 = jnp.float32

    x_ref = refs[0]
    layer_refs = refs[1:1 + 3 * num_layers]
    fcw_ref = refs[1 + 3 * num_layers]
    fcb_ref = refs[2 + 3 * num_layers]
    o_ref = refs[3 + 3 * num_layers]

    # Load weights once; hoist bias broadcasts above the time loop
    # (JAX does not CSE broadcast_in_dim inside the unrolled loop).
    wih = [layer_refs[3 * l][...] for l in range(num_layers)]        # bf16
    whh = [layer_refs[3 * l + 1][...] for l in range(num_layers)]    # bf16
    b0 = layer_refs[2][...]                                          # (1, 4H) f32
    bias_b = [None] + [
        jnp.broadcast_to(layer_refs[3 * l + 2][...], (Bp, 4 * H))
        for l in range(1, num_layers)
    ]

    # Hoisted layer-0 input projection: one GEMM for all T timesteps.
    # NOTE: at T*Bp = 64 rows this is 8 live vregs; stage in a VMEM scratch if
    # T*Bp ever grows large.
    pre0 = jnp.dot(x_ref[...], wih[0], preferred_element_type=f32) + b0  # (T*Bp, 4H)

    def cell(z, c):
        # Two full-lane-width EUP passes on the (Bp, 4H=128) tile, then lane
        # slices for i/f/g/o (gate order i, f, g, o).
        sig = jax.nn.sigmoid(z)
        th = jnp.tanh(z)
        i_g = sig[:, 0 * H:1 * H]
        f_g = sig[:, 1 * H:2 * H]
        g_g = th[:, 2 * H:3 * H]
        o_g = sig[:, 3 * H:4 * H]
        c_new = f_g * c + i_g * g_g          # f32 elementwise (v5e-safe)
        h_new = o_g * jnp.tanh(c_new)
        return h_new, c_new

    h = [jnp.zeros((Bp, H), f32) for _ in range(num_layers)]
    c = [jnp.zeros((Bp, H), f32) for _ in range(num_layers)]

    # Wavefront recurrence: time-outer, layer-inner, all state as SSA values
    # (no scratch-ref barrier between layers).  T is static -> fully unrolled.
    for t in range(T):
        # Layer 0: hoisted input projection + one 128-lane recurrent matmul.
        z0 = pre0[t * Bp:(t + 1) * Bp, :] + jnp.dot(
            h[0].astype(bf16), whh[0], preferred_element_type=f32)
        h[0], c[0] = cell(z0, c[0])
        # Upper layers consume h of the layer below at the same timestep.
        for l in range(1, num_layers):
            z = (bias_b[l]
                 + jnp.dot(h[l - 1].astype(bf16), wih[l], preferred_element_type=f32)
                 + jnp.dot(h[l].astype(bf16), whh[l], preferred_element_type=f32))
            h[l], c[l] = cell(z, c[l])

    # Final FC on the last timestep's top-layer hidden state (== out[:, -1, :]).
    # Output lanes padded to 128 in the wrapper -> full-vreg unmasked store.
    o_ref[...] = (jnp.dot(h[-1].astype(bf16), fcw_ref[...],
                          preferred_element_type=f32) + fcb_ref[...])


# ---------------------------------------------------------------------------
# Wrapper
# ---------------------------------------------------------------------------
@jax.jit
def lstm_forward(x, params):
    """Forward matching the PyTorch module. x: (B, T, input_dim) -> (B, output_dim)."""
    B, T, Din = x.shape
    H = params["layers"][0][1].shape[0]            # whh: (H, 4H)
    O = params["fc_w"].shape[-1]
    L = len(params["layers"])

    Bp = -(-B // 8) * 8                            # pad batch to the 8-sublane tile
    Op = -(-O // 128) * 128                        # lane-dense FC output

    # Time-major, batch padded to Bp, flattened: row t*Bp + b = (timestep t, batch b).
    x_tm = jnp.transpose(x, (1, 0, 2)).astype(jnp.float32)       # (T, B, Din)
    x_tm = jnp.pad(x_tm, ((0, 0), (0, Bp - B), (0, 0)))          # (T, Bp, Din)
    x2d = x_tm.reshape(T * Bp, Din).astype(jnp.bfloat16)

    flat = [x2d]
    for (wih, whh, b) in params["layers"]:
        flat += [wih.astype(jnp.bfloat16), whh.astype(jnp.bfloat16),
                 b.astype(jnp.float32)]
    fcw = jnp.pad(params["fc_w"].astype(jnp.float32), ((0, 0), (0, Op - O)))
    fcb = jnp.pad(params["fc_b"].astype(jnp.float32), ((0, 0), (0, Op - O)))
    flat += [fcw.astype(jnp.bfloat16), fcb]

    vmem = pl.BlockSpec(memory_space=pltpu.MemorySpace.VMEM)
    kernel = functools.partial(_lstm_fused_kernel, T, Bp, H, L)

    out = pl.pallas_call(
        kernel,
        out_shape=jax.ShapeDtypeStruct((Bp, Op), jnp.float32),
        in_specs=[vmem] * len(flat),
        out_specs=vmem,
    )(*flat)
    return out[:B, :O]


# ---------------------------------------------------------------------------
# Deterministic parameter init (PyTorch-style uniform(-1/sqrt(H), 1/sqrt(H)))
# Packed gate layout: columns [0:H]=i, [H:2H]=f, [2H:3H]=g, [3H:4H]=o.
# ---------------------------------------------------------------------------
def init_params(key, input_dim, hidden_dim, num_layers, output_dim):
    bound = 1.0 / (hidden_dim ** 0.5)
    layers = []
    for layer in range(num_layers):
        din = input_dim if layer == 0 else hidden_dim
        key, k1, k2, k3 = jax.random.split(key, 4)
        wih = jax.random.uniform(k1, (din, 4 * hidden_dim), jnp.float32, -bound, bound)
        whh = jax.random.uniform(k2, (hidden_dim, 4 * hidden_dim), jnp.float32, -bound, bound)
        # Single combined bias; when porting real nn.LSTM weights use b_ih + b_hh.
        b = jax.random.uniform(k3, (1, 4 * hidden_dim), jnp.float32, -bound, bound)
        layers.append((wih, whh, b))
    key, k1, k2 = jax.random.split(key, 3)
    fc_w = jax.random.uniform(k1, (hidden_dim, output_dim), jnp.float32, -bound, bound)
    fc_b = jax.random.uniform(k2, (1, output_dim), jnp.float32, -bound, bound)
    return {"layers": layers, "fc_w": fc_w, "fc_b": fc_b}


# ---------------------------------------------------------------------------
# Pure-JAX reference (lax.scan).  matmul_dtype=bf16 mirrors the kernel's MXU
# numerics (tight check); matmul_dtype=f32 is the exact module semantics
# (loose check bounding the documented bf16-operand error).
# ---------------------------------------------------------------------------
def lstm_forward_ref(x, params, matmul_dtype=jnp.float32):
    def mm(a, b):
        return jnp.dot(a.astype(matmul_dtype), b.astype(matmul_dtype),
                       preferred_element_type=jnp.float32,
                       precision=jax.lax.Precision.HIGHEST)

    seq = jnp.transpose(x, (1, 0, 2)).astype(jnp.float32)  # (T, B, Din)
    B = x.shape[0]
    for (wih, whh, b) in params["layers"]:
        H = whh.shape[0]

        def step(carry, x_t):
            h, c = carry
            z = mm(x_t, wih) + mm(h, whh) + b
            i = jax.nn.sigmoid(z[:, 0 * H:1 * H])
            f = jax.nn.sigmoid(z[:, 1 * H:2 * H])
            g = jnp.tanh(z[:, 2 * H:3 * H])
            o = jax.nn.sigmoid(z[:, 3 * H:4 * H])
            c_new = f * c + i * g
            h_new = o * jnp.tanh(c_new)
            return (h_new, c_new), h_new

        init = (jnp.zeros((B, H), jnp.float32), jnp.zeros((B, H), jnp.float32))
        _, seq = jax.lax.scan(step, init, seq)
    h_last = seq[-1]
    return mm(h_last, params["fc_w"]) + params["fc_b"]


# ---------------------------------------------------------------------------
if __name__ == "__main__":
    # Small shapes consistent with the module: batch=2, seq=8, input_dim=16,
    # hidden_dim=32 (so 4H = 128 = full lane width), num_layers=2, output_dim=1.
    B, T, INPUT_DIM, HIDDEN_DIM, NUM_LAYERS, OUTPUT_DIM = 2, 8, 16, 32, 2, 1

    key = jax.random.PRNGKey(0)
    key, kx = jax.random.split(key)
    x = jax.random.normal(kx, (B, T, INPUT_DIM), jnp.float32)

    params = init_params(key, INPUT_DIM, HIDDEN_DIM, NUM_LAYERS, OUTPUT_DIM)

    out = jax.block_until_ready(lstm_forward(x, params))
    assert out.shape == (B, OUTPUT_DIM), out.shape

    # Tight check vs. a reference that mirrors the kernel's bf16-operand /
    # f32-accumulate matmul numerics (verifies the kernel computes the LSTM).
    ref_mirror = jax.block_until_ready(lstm_forward_ref(x, params, jnp.bfloat16))
    assert jnp.allclose(out, ref_mirror, atol=5e-3, rtol=5e-3), (out, ref_mirror)

    # Loose check vs. the exact f32 module semantics; tolerance documents the
    # bf16-operand error accumulated over L=2 layers x T=8 recurrent steps.
    ref_exact = jax.block_until_ready(lstm_forward_ref(x, params, jnp.float32))
    assert jnp.allclose(out, ref_exact, atol=1e-1, rtol=1e-1), (out, ref_exact)

    print("KERNEL_OK")
</pallas_src>

<mosaic_0001>
module attributes {stable_mosaic.version = 11 : i64} {
  func.func @_lstm_fused_kernel(%arg0: memref<64x16xbf16, #tpu.memory_space<vmem>>, %arg1: memref<16x128xbf16, #tpu.memory_space<vmem>>, %arg2: memref<32x128xbf16, #tpu.memory_space<vmem>>, %arg3: memref<1x128xf32, #tpu.memory_space<vmem>>, %arg4: memref<32x128xbf16, #tpu.memory_space<vmem>>, %arg5: memref<32x128xbf16, #tpu.memory_space<vmem>>, %arg6: memref<1x128xf32, #tpu.memory_space<vmem>>, %arg7: memref<32x128xbf16, #tpu.memory_space<vmem>>, %arg8: memref<1x128xf32, #tpu.memory_space<vmem>>, %arg9: memref<8x128xf32, #tpu.memory_space<vmem>>) attributes {dimension_semantics = [], scalar_prefetch = 0 : i64, scratch_operands = 0 : i64, tpu.core_type = #tpu.core_type<tc>} {
    %c0 = arith.constant 0 : index
    %c0_0 = arith.constant 0 : index
    %0 = vector.load %arg1[%c0, %c0_0] : memref<16x128xbf16, #tpu.memory_space<vmem>>, vector<16x128xbf16>
    %c0_1 = arith.constant 0 : index
    %c0_2 = arith.constant 0 : index
    %1 = vector.load %arg4[%c0_1, %c0_2] : memref<32x128xbf16, #tpu.memory_space<vmem>>, vector<32x128xbf16>
    %c0_3 = arith.constant 0 : index
    %c0_4 = arith.constant 0 : index
    %2 = vector.load %arg2[%c0_3, %c0_4] : memref<32x128xbf16, #tpu.memory_space<vmem>>, vector<32x128xbf16>
    %c0_5 = arith.constant 0 : index
    %c0_6 = arith.constant 0 : index
    %3 = vector.load %arg5[%c0_5, %c0_6] : memref<32x128xbf16, #tpu.memory_space<vmem>>, vector<32x128xbf16>
    %c0_7 = arith.constant 0 : index
    %c0_8 = arith.constant 0 : index
    %4 = vector.load %arg3[%c0_7, %c0_8] : memref<1x128xf32, #tpu.memory_space<vmem>>, vector<1x128xf32>
    %c0_9 = arith.constant 0 : index
    %c0_10 = arith.constant 0 : index
    %5 = vector.load %arg6[%c0_9, %c0_10] : memref<1x128xf32, #tpu.memory_space<vmem>>, vector<1x128xf32>
    %6 = vector.shape_cast %5 : vector<1x128xf32> to vector<1x128xf32>
    %7 = vector.broadcast %6 : vector<1x128xf32> to vector<8x128xf32>
    %c0_11 = arith.constant 0 : index
    %c0_12 = arith.constant 0 : index
    %8 = vector.load %arg0[%c0_11, %c0_12] : memref<64x16xbf16, #tpu.memory_space<vmem>>, vector<64x16xbf16>
    %cst = arith.constant dense<0.000000e+00> : vector<64x128xf32>
    %9 = tpu.matmul %8, %0, %cst {dimension_numbers = #tpu.dot_dimension_numbers<[1], [0], [0], [1], [0, 0, 1, 1], [], []>} : vector<64x16xbf16>, vector<16x128xbf16>, vector<64x128xf32> -> vector<64x128xf32>
    %10 = vector.broadcast %4 : vector<1x128xf32> to vector<64x128xf32>
    %11 = arith.addf %9, %10 : vector<64x128xf32>
    %cst_13 = arith.constant 0.000000e+00 : f32
    %12 = vector.broadcast %cst_13 : f32 to vector<8x32xf32>
    %cst_14 = arith.constant 0.000000e+00 : f32
    %13 = vector.broadcast %cst_14 : f32 to vector<8x32xf32>
    %cst_15 = arith.constant 0.000000e+00 : f32
    %14 = vector.broadcast %cst_15 : f32 to vector<8x32xf32>
    %cst_16 = arith.constant 0.000000e+00 : f32
    %15 = vector.broadcast %cst_16 : f32 to vector<8x32xf32>
    %16 = vector.extract_strided_slice %11 {offsets = [0, 0], sizes = [8, 128], strides = [1, 1]} : vector<64x128xf32> to vector<8x128xf32>
    %17 = arith.truncf %12 : vector<8x32xf32> to vector<8x32xbf16>
    %cst_17 = arith.constant dense<0.000000e+00> : vector<8x128xf32>
    %18 = tpu.matmul %17, %2, %cst_17 {dimension_numbers = #tpu.dot_dimension_numbers<[1], [0], [0], [1], [0, 0, 1, 1], [], []>} : vector<8x32xbf16>, vector<32x128xbf16>, vector<8x128xf32> -> vector<8x128xf32>
    %19 = arith.addf %16, %18 : vector<8x128xf32>
    %20 = arith.negf %19 : vector<8x128xf32>
    %21 = math.exp %20 : vector<8x128xf32>
    %cst_18 = arith.constant 1.000000e+00 : f32
    %22 = vector.broadcast %cst_18 : f32 to vector<8x128xf32>
    %23 = arith.addf %22, %21 : vector<8x128xf32>
    %24 = arith.divf %22, %23 : vector<8x128xf32>
    %25 = math.tanh %19 : vector<8x128xf32>
    %26 = vector.extract_strided_slice %24 {offsets = [0, 0], sizes = [8, 32], strides = [1, 1]} : vector<8x128xf32> to vector<8x32xf32>
    %27 = vector.extract_strided_slice %24 {offsets = [0, 32], sizes = [8, 32], strides = [1, 1]} : vector<8x128xf32> to vector<8x32xf32>
    %28 = vector.extract_strided_slice %25 {offsets = [0, 64], sizes = [8, 32], strides = [1, 1]} : vector<8x128xf32> to vector<8x32xf32>
    %29 = vector.extract_strided_slice %24 {offsets = [0, 96], sizes = [8, 32], strides = [1, 1]} : vector<8x128xf32> to vector<8x32xf32>
    %30 = arith.mulf %27, %14 : vector<8x32xf32>
    %31 = arith.mulf %26, %28 : vector<8x32xf32>
    %32 = arith.addf %30, %31 : vector<8x32xf32>
    %33 = math.tanh %32 : vector<8x32xf32>
    %34 = arith.mulf %29, %33 : vector<8x32xf32>
    %35 = arith.truncf %34 : vector<8x32xf32> to vector<8x32xbf16>
    %cst_19 = arith.constant dense<0.000000e+00> : vector<8x128xf32>
    %36 = tpu.matmul %35, %1, %cst_19 {dimension_numbers = #tpu.dot_dimension_numbers<[1], [0], [0], [1], [0, 0, 1, 1], [], []>} : vector<8x32xbf16>, vector<32x128xbf16>, vector<8x128xf32> -> vector<8x128xf32>
    %37 = arith.addf %7, %36 : vector<8x128xf32>
    %38 = arith.truncf %13 : vector<8x32xf32> to vector<8x32xbf16>
    %cst_20 = arith.constant dense<0.000000e+00> : vector<8x128xf32>
    %39 = tpu.matmul %38, %3, %cst_20 {dimension_numbers = #tpu.dot_dimension_numbers<[1], [0], [0], [1], [0, 0, 1, 1], [], []>} : vector<8x32xbf16>, vector<32x128xbf16>, vector<8x128xf32> -> vector<8x128xf32>
    %40 = arith.addf %37, %39 : vector<8x128xf32>
    %41 = arith.negf %40 : vector<8x128xf32>
    %42 = math.exp %41 : vector<8x128xf32>
    %cst_21 = arith.constant 1.000000e+00 : f32
    %43 = vector.broadcast %cst_21 : f32 to vector<8x128xf32>
    %44 = arith.addf %43, %42 : vector<8x128xf32>
    %45 = arith.divf %43, %44 : vector<8x128xf32>
    %46 = math.tanh %40 : vector<8x128xf32>
    %47 = vector.extract_strided_slice %45 {offsets = [0, 0], sizes = [8, 32], strides = [1, 1]} : vector<8x128xf32> to vector<8x32xf32>
    %48 = vector.extract_strided_slice %45 {offsets = [0, 32], sizes = [8, 32], strides = [1, 1]} : vector<8x128xf32> to vector<8x32xf32>
    %49 = vector.extract_strided_slice %46 {offsets = [0, 64], sizes = [8, 32], strides = [1, 1]} : vector<8x128xf32> to vector<8x32xf32>
    %50 = vector.extract_strided_slice %45 {offsets = [0, 96], sizes = [8, 32], strides = [1, 1]} : vector<8x128xf32> to vector<8x32xf32>
    %51 = arith.mulf %48, %15 : vector<8x32xf32>
    %52 = arith.mulf %47, %49 : vector<8x32xf32>
    %53 = arith.addf %51, %52 : vector<8x32xf32>
    %54 = math.tanh %53 : vector<8x32xf32>
    %55 = arith.mulf %50, %54 : vector<8x32xf32>
    %56 = vector.extract_strided_slice %11 {offsets = [8, 0], sizes = [8, 128], strides = [1, 1]} : vector<64x128xf32> to vector<8x128xf32>
    %57 = arith.truncf %34 : vector<8x32xf32> to vector<8x32xbf16>
    %cst_22 = arith.constant dense<0.000000e+00> : vector<8x128xf32>
    %58 = tpu.matmul %57, %2, %cst_22 {dimension_numbers = #tpu.dot_dimension_numbers<[1], [0], [0], [1], [0, 0, 1, 1], [], []>} : vector<8x32xbf16>, vector<32x128xbf16>, vector<8x128xf32> -> vector<8x128xf32>
    %59 = arith.addf %56, %58 : vector<8x128xf32>
    %60 = arith.negf %59 : vector<8x128xf32>
    %61 = math.exp %60 : vector<8x128xf32>
    %cst_23 = arith.constant 1.000000e+00 : f32
    %62 = vector.broadcast %cst_23 : f32 to vector<8x128xf32>
    %63 = arith.addf %62, %61 : vector<8x128xf32>
    %64 = arith.divf %62, %63 : vector<8x128xf32>
    %65 = math.tanh %59 : vector<8x128xf32>
    %66 = vector.extract_strided_slice %64 {offsets = [0, 0], sizes = [8, 32], strides = [1, 1]} : vector<8x128xf32> to vector<8x32xf32>
    %67 = vector.extract_strided_slice %64 {offsets = [0, 32], sizes = [8, 32], strides = [1, 1]} : vector<8x128xf32> to vector<8x32xf32>
    %68 = vector.extract_strided_slice %65 {offsets = [0, 64], sizes = [8, 32], strides = [1, 1]} : vector<8x128xf32> to vector<8x32xf32>
    %69 = vector.extract_strided_slice %64 {offsets = [0, 96], sizes = [8, 32], strides = [1, 1]} : vector<8x128xf32> to vector<8x32xf32>
    %70 = arith.mulf %67, %32 : vector<8x32xf32>
    %71 = arith.mulf %66, %68 : vector<8x32xf32>
    %72 = arith.addf %70, %71 : vector<8x32xf32>
    %73 = math.tanh %72 : vector<8x32xf32>
    %74 = arith.mulf %69, %73 : vector<8x32xf32>
    %75 = arith.truncf %74 : vector<8x32xf32> to vector<8x32xbf16>
    %cst_24 = arith.constant dense<0.000000e+00> : vector<8x128xf32>
    %76 = tpu.matmul %75, %1, %cst_24 {dimension_numbers = #tpu.dot_dimension_numbers<[1], [0], [0], [1], [0, 0, 1, 1], [], []>} : vector<8x32xbf16>, vector<32x128xbf16>, vector<8x128xf32> -> vector<8x128xf32>
    %77 = arith.addf %7, %76 : vector<8x128xf32>
    %78 = arith.truncf %55 : vector<8x32xf32> to vector<8x32xbf16>
    %cst_25 = arith.constant dense<0.000000e+00> : vector<8x128xf32>
    %79 = tpu.matmul %78, %3, %cst_25 {dimension_numbers = #tpu.dot_dimension_numbers<[1], [0], [0], [1], [0, 0, 1, 1], [], []>} : vector<8x32xbf16>, vector<32x128xbf16>, vector<8x128xf32> -> vector<8x128xf32>
    %80 = arith.addf %77, %79 : vector<8x128xf32>
    %81 = arith.negf %80 : vector<8x128xf32>
    %82 = math.exp %81 : vector<8x128xf32>
    %cst_26 = arith.constant 1.000000e+00 : f32
    %83 = vector.broadcast %cst_26 : f32 to vector<8x128xf32>
    %84 = arith.addf %83, %82 : vector<8x128xf32>
    %85 = arith.divf %83, %84 : vector<8x128xf32>
    %86 = math.tanh %80 : vector<8x128xf32>
    %87 = vector.extract_strided_slice %85 {offsets = [0, 0], sizes = [8, 32], strides = [1, 1]} : vector<8x128xf32> to vector<8x32xf32>
    %88 = vector.extract_strided_slice %85 {offsets = [0, 32], sizes = [8, 32], strides = [1, 1]} : vector<8x128xf32> to vector<8x32xf32>
    %89 = vector.extract_strided_slice %86 {offsets = [0, 64], sizes = [8, 32], strides = [1, 1]} : vector<8x128xf32> to vector<8x32xf32>
    %90 = vector.extract_strided_slice %85 {offsets = [0, 96], sizes = [8, 32], strides = [1, 1]} : vector<8x128xf32> to vector<8x32xf32>
    %91 = arith.mulf %88, %53 : vector<8x32xf32>
    %92 = arith.mulf %87, %89 : vector<8x32xf32>
    %93 = arith.addf %91, %92 : vector<8x32xf32>
    %94 = math.tanh %93 : vector<8x32xf32>
    %95 = arith.mulf %90, %94 : vector<8x32xf32>
    %96 = vector.extract_strided_slice %11 {offsets = [16, 0], sizes = [8, 128], strides = [1, 1]} : vector<64x128xf32> to vector<8x128xf32>
    %97 = arith.truncf %74 : vector<8x32xf32> to vector<8x32xbf16>
    %cst_27 = arith.constant dense<0.000000e+00> : vector<8x128xf32>
    %98 = tpu.matmul %97, %2, %cst_27 {dimension_numbers = #tpu.dot_dimension_numbers<[1], [0], [0], [1], [0, 0, 1, 1], [], []>} : vector<8x32xbf16>, vector<32x128xbf16>, vector<8x128xf32> -> vector<8x128xf32>
    %99 = arith.addf %96, %98 : vector<8x128xf32>
    %100 = arith.negf %99 : vector<8x128xf32>
    %101 = math.exp %100 : vector<8x128xf32>
    %cst_28 = arith.constant 1.000000e+00 : f32
    %102 = vector.broadcast %cst_28 : f32 to vector<8x128xf32>
    %103 = arith.addf %102, %101 : vector<8x128xf32>
    %104 = arith.divf %102, %103 : vector<8x128xf32>
    %105 = math.tanh %99 : vector<8x128xf32>
    %106 = vector.extract_strided_slice %104 {offsets = [0, 0], sizes = [8, 32], strides = [1, 1]} : vector<8x128xf32> to vector<8x32xf32>
    %107 = vector.extract_strided_slice %104 {offsets = [0, 32], sizes = [8, 32], strides = [1, 1]} : vector<8x128xf32> to vector<8x32xf32>
    %108 = vector.extract_strided_slice %105 {offsets = [0, 64], sizes = [8, 32], strides = [1, 1]} : vector<8x128xf32> to vector<8x32xf32>
    %109 = vector.extract_strided_slice %104 {offsets = [0, 96], sizes = [8, 32], strides = [1, 1]} : vector<8x128xf32> to vector<8x32xf32>
    %110 = arith.mulf %107, %72 : vector<8x32xf32>
    %111 = arith.mulf %106, %108 : vector<8x32xf32>
    %112 = arith.addf %110, %111 : vector<8x32xf32>
    %113 = math.tanh %112 : vector<8x32xf32>
    %114 = arith.mulf %109, %113 : vector<8x32xf32>
    %115 = arith.truncf %114 : vector<8x32xf32> to vector<8x32xbf16>
    %cst_29 = arith.constant dense<0.000000e+00> : vector<8x128xf32>
    %116 = tpu.matmul %115, %1, %cst_29 {dimension_numbers = #tpu.dot_dimension_numbers<[1], [0], [0], [1], [0, 0, 1, 1], [], []>} : vector<8x32xbf16>, vector<32x128xbf16>, vector<8x128xf32> -> vector<8x128xf32>
    %117 = arith.addf %7, %116 : vector<8x128xf32>
    %118 = arith.truncf %95 : vector<8x32xf32> to vector<8x32xbf16>
    %cst_30 = arith.constant dense<0.000000e+00> : vector<8x128xf32>
    %119 = tpu.matmul %118, %3, %cst_30 {dimension_numbers = #tpu.dot_dimension_numbers<[1], [0], [0], [1], [0, 0, 1, 1], [], []>} : vector<8x32xbf16>, vector<32x128xbf16>, vector<8x128xf32> -> vector<8x128xf32>
    %120 = arith.addf %117, %119 : vector<8x128xf32>
    %121 = arith.negf %120 : vector<8x128xf32>
    %122 = math.exp %121 : vector<8x128xf32>
    %cst_31 = arith.constant 1.000000e+00 : f32
    %123 = vector.broadcast %cst_31 : f32 to vector<8x128xf32>
    %124 = arith.addf %123, %122 : vector<8x128xf32>
    %125 = arith.divf %123, %124 : vector<8x128xf32>
    %126 = math.tanh %120 : vector<8x128xf32>
    %127 = vector.extract_strided_slice %125 {offsets = [0, 0], sizes = [8, 32], strides = [1, 1]} : vector<8x128xf32> to vector<8x32xf32>
    %128 = vector.extract_strided_slice %125 {offsets = [0, 32], sizes = [8, 32], strides = [1, 1]} : vector<8x128xf32> to vector<8x32xf32>
    %129 = vector.extract_strided_slice %126 {offsets = [0, 64], sizes = [8, 32], strides = [1, 1]} : vector<8x128xf32> to vector<8x32xf32>
    %130 = vector.extract_strided_slice %125 {offsets = [0, 96], sizes = [8, 32], strides = [1, 1]} : vector<8x128xf32> to vector<8x32xf32>
    %131 = arith.mulf %128, %93 : vector<8x32xf32>
    %132 = arith.mulf %127, %129 : vector<8x32xf32>
    %133 = arith.addf %131, %132 : vector<8x32xf32>
    %134 = math.tanh %133 : vector<8x32xf32>
    %135 = arith.mulf %130, %134 : vector<8x32xf32>
    %136 = vector.extract_strided_slice %11 {offsets = [24, 0], sizes = [8, 128], strides = [1, 1]} : vector<64x128xf32> to vector<8x128xf32>
    %137 = arith.truncf %114 : vector<8x32xf32> to vector<8x32xbf16>
    %cst_32 = arith.constant dense<0.000000e+00> : vector<8x128xf32>
    %138 = tpu.matmul %137, %2, %cst_32 {dimension_numbers = #tpu.dot_dimension_numbers<[1], [0], [0], [1], [0, 0, 1, 1], [], []>} : vector<8x32xbf16>, vector<32x128xbf16>, vector<8x128xf32> -> vector<8x128xf32>
    %139 = arith.addf %136, %138 : vector<8x128xf32>
    %140 = arith.negf %139 : vector<8x128xf32>
    %141 = math.exp %140 : vector<8x128xf32>
    %cst_33 = arith.constant 1.000000e+00 : f32
    %142 = vector.broadcast %cst_33 : f32 to vector<8x128xf32>
    %143 = arith.addf %142, %141 : vector<8x128xf32>
    %144 = arith.divf %142, %143 : vector<8x128xf32>
    %145 = math.tanh %139 : vector<8x128xf32>
    %146 = vector.extract_strided_slice %144 {offsets = [0, 0], sizes = [8, 32], strides = [1, 1]} : vector<8x128xf32> to vector<8x32xf32>
    %147 = vector.extract_strided_slice %144 {offsets = [0, 32], sizes = [8, 32], strides = [1, 1]} : vector<8x128xf32> to vector<8x32xf32>
    %148 = vector.extract_strided_slice %145 {offsets = [0, 64], sizes = [8, 32], strides = [1, 1]} : vector<8x128xf32> to vector<8x32xf32>
    %149 = vector.extract_strided_slice %144 {offsets = [0, 96], sizes = [8, 32], strides = [1, 1]} : vector<8x128xf32> to vector<8x32xf32>
    %150 = arith.mulf %147, %112 : vector<8x32xf32>
    %151 = arith.mulf %146, %148 : vector<8x32xf32>
    %152 = arith.addf %150, %151 : vector<8x32xf32>
    %153 = math.tanh %152 : vector<8x32xf32>
    %154 = arith.mulf %149, %153 : vector<8x32xf32>
    %155 = arith.truncf %154 : vector<8x32xf32> to vector<8x32xbf16>
    %cst_34 = arith.constant dense<0.000000e+00> : vector<8x128xf32>
    %156 = tpu.matmul %155, %1, %cst_34 {dimension_numbers = #tpu.dot_dimension_numbers<[1], [0], [0], [1], [0, 0, 1, 1], [], []>} : vector<8x32xbf16>, vector<32x128xbf16>, vector<8x128xf32> -> vector<8x128xf32>
    %157 = arith.addf %7, %156 : vector<8x128xf32>
    %158 = arith.truncf %135 : vector<8x32xf32> to vector<8x32xbf16>
    %cst_35 = arith.constant dense<0.000000e+00> : vector<8x128xf32>
    %159 = tpu.matmul %158, %3, %cst_35 {dimension_numbers = #tpu.dot_dimension_numbers<[1], [0], [0], [1], [0, 0, 1, 1], [], []>} : vector<8x32xbf16>, vector<32x128xbf16>, vector<8x128xf32> -> vector<8x128xf32>
    %160 = arith.addf %157, %159 : vector<8x128xf32>
    %161 = arith.negf %160 : vector<8x128xf32>
    %162 = math.exp %161 : vector<8x128xf32>
    %cst_36 = arith.constant 1.000000e+00 : f32
    %163 = vector.broadcast %cst_36 : f32 to vector<8x128xf32>
    %164 = arith.addf %163, %162 : vector<8x128xf32>
    %165 = arith.divf %163, %164 : vector<8x128xf32>
    %166 = math.tanh %160 : vector<8x128xf32>
    %167 = vector.extract_strided_slice %165 {offsets = [0, 0], sizes = [8, 32], strides = [1, 1]} : vector<8x128xf32> to vector<8x32xf32>
    %168 = vector.extract_strided_slice %165 {offsets = [0, 32], sizes = [8, 32], strides = [1, 1]} : vector<8x128xf32> to vector<8x32xf32>
    %169 = vector.extract_strided_slice %166 {offsets = [0, 64], sizes = [8, 32], strides = [1, 1]} : vector<8x128xf32> to vector<8x32xf32>
    %170 = vector.extract_strided_slice %165 {offsets = [0, 96], sizes = [8, 32], strides = [1, 1]} : vector<8x128xf32> to vector<8x32xf32>
    %171 = arith.mulf %168, %133 : vector<8x32xf32>
    %172 = arith.mulf %167, %169 : vector<8x32xf32>
    %173 = arith.addf %171, %172 : vector<8x32xf32>
    %174 = math.tanh %173 : vector<8x32xf32>
    %175 = arith.mulf %170, %174 : vector<8x32xf32>
    %176 = vector.extract_strided_slice %11 {offsets = [32, 0], sizes = [8, 128], strides = [1, 1]} : vector<64x128xf32> to vector<8x128xf32>
    %177 = arith.truncf %154 : vector<8x32xf32> to vector<8x32xbf16>
    %cst_37 = arith.constant dense<0.000000e+00> : vector<8x128xf32>
    %178 = tpu.matmul %177, %2, %cst_37 {dimension_numbers = #tpu.dot_dimension_numbers<[1], [0], [0], [1], [0, 0, 1, 1], [], []>} : vector<8x32xbf16>, vector<32x128xbf16>, vector<8x128xf32> -> vector<8x128xf32>
    %179 = arith.addf %176, %178 : vector<8x128xf32>
    %180 = arith.negf %179 : vector<8x128xf32>
    %181 = math.exp %180 : vector<8x128xf32>
    %cst_38 = arith.constant 1.000000e+00 : f32
    %182 = vector.broadcast %cst_38 : f32 to vector<8x128xf32>
    %183 = arith.addf %182, %181 : vector<8x128xf32>
    %184 = arith.divf %182, %183 : vector<8x128xf32>
    %185 = math.tanh %179 : vector<8x128xf32>
    %186 = vector.extract_strided_slice %184 {offsets = [0, 0], sizes = [8, 32], strides = [1, 1]} : vector<8x128xf32> to vector<8x32xf32>
    %187 = vector.extract_strided_slice %184 {offsets = [0, 32], sizes = [8, 32], strides = [1, 1]} : vector<8x128xf32> to vector<8x32xf32>
    %188 = vector.extract_strided_slice %185 {offsets = [0, 64], sizes = [8, 32], strides = [1, 1]} : vector<8x128xf32> to vector<8x32xf32>
    %189 = vector.extract_strided_slice %184 {offsets = [0, 96], sizes = [8, 32], strides = [1, 1]} : vector<8x128xf32> to vector<8x32xf32>
    %190 = arith.mulf %187, %152 : vector<8x32xf32>
    %191 = arith.mulf %186, %188 : vector<8x32xf32>
    %192 = arith.addf %190, %191 : vector<8x32xf32>
    %193 = math.tanh %192 : vector<8x32xf32>
    %194 = arith.mulf %189, %193 : vector<8x32xf32>
    %195 = arith.truncf %194 : vector<8x32xf32> to vector<8x32xbf16>
    %cst_39 = arith.constant dense<0.000000e+00> : vector<8x128xf32>
    %196 = tpu.matmul %195, %1, %cst_39 {dimension_numbers = #tpu.dot_dimension_numbers<[1], [0], [0], [1], [0, 0, 1, 1], [], []>} : vector<8x32xbf16>, vector<32x128xbf16>, vector<8x128xf32> -> vector<8x128xf32>
    %197 = arith.addf %7, %196 : vector<8x128xf32>
    %198 = arith.truncf %175 : vector<8x32xf32> to vector<8x32xbf16>
    %cst_40 = arith.constant dense<0.000000e+00> : vector<8x128xf32>
    %199 = tpu.matmul %198, %3, %cst_40 {dimension_numbers = #tpu.dot_dimension_numbers<[1], [0], [0], [1], [0, 0, 1, 1], [], []>} : vector<8x32xbf16>, vector<32x128xbf16>, vector<8x128xf32> -> vector<8x128xf32>
    %200 = arith.addf %197, %199 : vector<8x128xf32>
    %201 = arith.negf %200 : vector<8x128xf32>
    %202 = math.exp %201 : vector<8x128xf32>
    %cst_41 = arith.constant 1.000000e+00 : f32
    %203 = vector.broadcast %cst_41 : f32 to vector<8x128xf32>
    %204 = arith.addf %203, %202 : vector<8x128xf32>
    %205 = arith.divf %203, %204 : vector<8x128xf32>
    %206 = math.tanh %200 : vector<8x128xf32>
    %207 = vector.extract_strided_slice %205 {offsets = [0, 0], sizes = [8, 32], strides = [1, 1]} : vector<8x128xf32> to vector<8x32xf32>
    %208 = vector.extract_strided_slice %205 {offsets = [0, 32], sizes = [8, 32], strides = [1, 1]} : vector<8x128xf32> to vector<8x32xf32>
    %209 = vector.extract_strided_slice %206 {offsets = [0, 64], sizes = [8, 32], strides = [1, 1]} : vector<8x128xf32> to vector<8x32xf32>
    %210 = vector.extract_strided_slice %205 {offsets = [0, 96], sizes = [8, 32], strides = [1, 1]} : vector<8x128xf32> to vector<8x32xf32>
    %211 = arith.mulf %208, %173 : vector<8x32xf32>
    %212 = arith.mulf %207, %209 : vector<8x32xf32>
    %213 = arith.addf %211, %212 : vector<8x32xf32>
    %214 = math.tanh %213 : vector<8x32xf32>
    %215 = arith.mulf %210, %214 : vector<8x32xf32>
    %216 = vector.extract_strided_slice %11 {offsets = [40, 0], sizes = [8, 128], strides = [1, 1]} : vector<64x128xf32> to vector<8x128xf32>
    %217 = arith.truncf %194 : vector<8x32xf32> to vector<8x32xbf16>
    %cst_42 = arith.constant dense<0.000000e+00> : vector<8x128xf32>
    %218 = tpu.matmul %217, %2, %cst_42 {dimension_numbers = #tpu.dot_dimension_numbers<[1], [0], [0], [1], [0, 0, 1, 1], [], []>} : vector<8x32xbf16>, vector<32x128xbf16>, vector<8x128xf32> -> vector<8x128xf32>
    %219 = arith.addf %216, %218 : vector<8x128xf32>
    %220 = arith.negf %219 : vector<8x128xf32>
    %221 = math.exp %220 : vector<8x128xf32>
    %cst_43 = arith.constant 1.000000e+00 : f32
    %222 = vector.broadcast %cst_43 : f32 to vector<8x128xf32>
    %223 = arith.addf %222, %221 : vector<8x128xf32>
    %224 = arith.divf %222, %223 : vector<8x128xf32>
    %225 = math.tanh %219 : vector<8x128xf32>
    %226 = vector.extract_strided_slice %224 {offsets = [0, 0], sizes = [8, 32], strides = [1, 1]} : vector<8x128xf32> to vector<8x32xf32>
    %227 = vector.extract_strided_slice %224 {offsets = [0, 32], sizes = [8, 32], strides = [1, 1]} : vector<8x128xf32> to vector<8x32xf32>
    %228 = vector.extract_strided_slice %225 {offsets = [0, 64], sizes = [8, 32], strides = [1, 1]} : vector<8x128xf32> to vector<8x32xf32>
    %229 = vector.extract_strided_slice %224 {offsets = [0, 96], sizes = [8, 32], strides = [1, 1]} : vector<8x128xf32> to vector<8x32xf32>
    %230 = arith.mulf %227, %192 : vector<8x32xf32>
    %231 = arith.mulf %226, %228 : vector<8x32xf32>
    %232 = arith.addf %230, %231 : vector<8x32xf32>
    %233 = math.tanh %232 : vector<8x32xf32>
    %234 = arith.mulf %229, %233 : vector<8x32xf32>
    %235 = arith.truncf %234 : vector<8x32xf32> to vector<8x32xbf16>
    %cst_44 = arith.constant dense<0.000000e+00> : vector<8x128xf32>
    %236 = tpu.matmul %235, %1, %cst_44 {dimension_numbers = #tpu.dot_dimension_numbers<[1], [0], [0], [1], [0, 0, 1, 1], [], []>} : vector<8x32xbf16>, vector<32x128xbf16>, vector<8x128xf32> -> vector<8x128xf32>
    %237 = arith.addf %7, %236 : vector<8x128xf32>
    %238 = arith.truncf %215 : vector<8x32xf32> to vector<8x32xbf16>
    %cst_45 = arith.constant dense<0.000000e+00> : vector<8x128xf32>
    %239 = tpu.matmul %238, %3, %cst_45 {dimension_numbers = #tpu.dot_dimension_numbers<[1], [0], [0], [1], [0, 0, 1, 1], [], []>} : vector<8x32xbf16>, vector<32x128xbf16>, vector<8x128xf32> -> vector<8x128xf32>
    %240 = arith.addf %237, %239 : vector<8x128xf32>
    %241 = arith.negf %240 : vector<8x128xf32>
    %242 = math.exp %241 : vector<8x128xf32>
    %cst_46 = arith.constant 1.000000e+00 : f32
    %243 = vector.broadcast %cst_46 : f32 to vector<8x128xf32>
    %244 = arith.addf %243, %242 : vector<8x128xf32>
    %245 = arith.divf %243, %244 : vector<8x128xf32>
    %246 = math.tanh %240 : vector<8x128xf32>
    %247 = vector.extract_strided_slice %245 {offsets = [0, 0], sizes = [8, 32], strides = [1, 1]} : vector<8x128xf32> to vector<8x32xf32>
    %248 = vector.extract_strided_slice %245 {offsets = [0, 32], sizes = [8, 32], strides = [1, 1]} : vector<8x128xf32> to vector<8x32xf32>
    %249 = vector.extract_strided_slice %246 {offsets = [0, 64], sizes = [8, 32], strides = [1, 1]} : vector<8x128xf32> to vector<8x32xf32>
    %250 = vector.extract_strided_slice %245 {offsets = [0, 96], sizes = [8, 32], strides = [1, 1]} : vector<8x128xf32> to vector<8x32xf32>
    %251 = arith.mulf %248, %213 : vector<8x32xf32>
    %252 = arith.mulf %247, %249 : vector<8x32xf32>
    %253 = arith.addf %251, %252 : vector<8x32xf32>
    %254 = math.tanh %253 : vector<8x32xf32>
    %255 = arith.mulf %250, %254 : vector<8x32xf32>
    %256 = vector.extract_strided_slice %11 {offsets = [48, 0], sizes = [8, 128], strides = [1, 1]} : vector<64x128xf32> to vector<8x128xf32>
    %257 = arith.truncf %234 : vector<8x32xf32> to vector<8x32xbf16>
    %cst_47 = arith.constant dense<0.000000e+00> : vector<8x128xf32>
    %258 = tpu.matmul %257, %2, %cst_47 {dimension_numbers = #tpu.dot_dimension_numbers<[1], [0], [0], [1], [0, 0, 1, 1], [], []>} : vector<8x32xbf16>, vector<32x128xbf16>, vector<8x128xf32> -> vector<8x128xf32>
    %259 = arith.addf %256, %258 : vector<8x128xf32>
    %260 = arith.negf %259 : vector<8x128xf32>
    %261 = math.exp %260 : vector<8x128xf32>
    %cst_48 = arith.constant 1.000000e+00 : f32
    %262 = vector.broadcast %cst_48 : f32 to vector<8x128xf32>
    %263 = arith.addf %262, %261 : vector<8x128xf32>
    %264 = arith.divf %262, %263 : vector<8x128xf32>
    %265 = math.tanh %259 : vector<8x128xf32>
    %266 = vector.extract_strided_slice %264 {offsets = [0, 0], sizes = [8, 32], strides = [1, 1]} : vector<8x128xf32> to vector<8x32xf32>
    %267 = vector.extract_strided_slice %264 {offsets = [0, 32], sizes = [8, 32], strides = [1, 1]} : vector<8x128xf32> to vector<8x32xf32>
    %268 = vector.extract_strided_slice %265 {offsets = [0, 64], sizes = [8, 32], strides = [1, 1]} : vector<8x128xf32> to vector<8x32xf32>
    %269 = vector.extract_strided_slice %264 {offsets = [0, 96], sizes = [8, 32], strides = [1, 1]} : vector<8x128xf32> to vector<8x32xf32>
    %270 = arith.mulf %267, %232 : vector<8x32xf32>
    %271 = arith.mulf %266, %268 : vector<8x32xf32>
    %272 = arith.addf %270, %271 : vector<8x32xf32>
    %273 = math.tanh %272 : vector<8x32xf32>
    %274 = arith.mulf %269, %273 : vector<8x32xf32>
    %275 = arith.truncf %274 : vector<8x32xf32> to vector<8x32xbf16>
    %cst_49 = arith.constant dense<0.000000e+00> : vector<8x128xf32>
    %276 = tpu.matmul %275, %1, %cst_49 {dimension_numbers = #tpu.dot_dimension_numbers<[1], [0], [0], [1], [0, 0, 1, 1], [], []>} : vector<8x32xbf16>, vector<32x128xbf16>, vector<8x128xf32> -> vector<8x128xf32>
    %277 = arith.addf %7, %276 : vector<8x128xf32>
    %278 = arith.truncf %255 : vector<8x32xf32> to vector<8x32xbf16>
    %cst_50 = arith.constant dense<0.000000e+00> : vector<8x128xf32>
    %279 = tpu.matmul %278, %3, %cst_50 {dimension_numbers = #tpu.dot_dimension_numbers<[1], [0], [0], [1], [0, 0, 1, 1], [], []>} : vector<8x32xbf16>, vector<32x128xbf16>, vector<8x128xf32> -> vector<8x128xf32>
    %280 = arith.addf %277, %279 : vector<8x128xf32>
    %281 = arith.negf %280 : vector<8x128xf32>
    %282 = math.exp %281 : vector<8x128xf32>
    %cst_51 = arith.constant 1.000000e+00 : f32
    %283 = vector.broadcast %cst_51 : f32 to vector<8x128xf32>
    %284 = arith.addf %283, %282 : vector<8x128xf32>
    %285 = arith.divf %283, %284 : vector<8x128xf32>
    %286 = math.tanh %280 : vector<8x128xf32>
    %287 = vector.extract_strided_slice %285 {offsets = [0, 0], sizes = [8, 32], strides = [1, 1]} : vector<8x128xf32> to vector<8x32xf32>
    %288 = vector.extract_strided_slice %285 {offsets = [0, 32], sizes = [8, 32], strides = [1, 1]} : vector<8x128xf32> to vector<8x32xf32>
    %289 = vector.extract_strided_slice %286 {offsets = [0, 64], sizes = [8, 32], strides = [1, 1]} : vector<8x128xf32> to vector<8x32xf32>
    %290 = vector.extract_strided_slice %285 {offsets = [0, 96], sizes = [8, 32], strides = [1, 1]} : vector<8x128xf32> to vector<8x32xf32>
    %291 = arith.mulf %288, %253 : vector<8x32xf32>
    %292 = arith.mulf %287, %289 : vector<8x32xf32>
    %293 = arith.addf %291, %292 : vector<8x32xf32>
    %294 = math.tanh %293 : vector<8x32xf32>
    %295 = arith.mulf %290, %294 : vector<8x32xf32>
    %296 = vector.extract_strided_slice %11 {offsets = [56, 0], sizes = [8, 128], strides = [1, 1]} : vector<64x128xf32> to vector<8x128xf32>
    %297 = arith.truncf %274 : vector<8x32xf32> to vector<8x32xbf16>
    %cst_52 = arith.constant dense<0.000000e+00> : vector<8x128xf32>
    %298 = tpu.matmul %297, %2, %cst_52 {dimension_numbers = #tpu.dot_dimension_numbers<[1], [0], [0], [1], [0, 0, 1, 1], [], []>} : vector<8x32xbf16>, vector<32x128xbf16>, vector<8x128xf32> -> vector<8x128xf32>
    %299 = arith.addf %296, %298 : vector<8x128xf32>
    %300 = arith.negf %299 : vector<8x128xf32>
    %301 = math.exp %300 : vector<8x128xf32>
    %cst_53 = arith.constant 1.000000e+00 : f32
    %302 = vector.broadcast %cst_53 : f32 to vector<8x128xf32>
    %303 = arith.addf %302, %301 : vector<8x128xf32>
    %304 = arith.divf %302, %303 : vector<8x128xf32>
    %305 = math.tanh %299 : vector<8x128xf32>
    %306 = vector.extract_strided_slice %304 {offsets = [0, 0], sizes = [8, 32], strides = [1, 1]} : vector<8x128xf32> to vector<8x32xf32>
    %307 = vector.extract_strided_slice %304 {offsets = [0, 32], sizes = [8, 32], strides = [1, 1]} : vector<8x128xf32> to vector<8x32xf32>
    %308 = vector.extract_strided_slice %305 {offsets = [0, 64], sizes = [8, 32], strides = [1, 1]} : vector<8x128xf32> to vector<8x32xf32>
    %309 = vector.extract_strided_slice %304 {offsets = [0, 96], sizes = [8, 32], strides = [1, 1]} : vector<8x128xf32> to vector<8x32xf32>
    %310 = arith.mulf %307, %272 : vector<8x32xf32>
    %311 = arith.mulf %306, %308 : vector<8x32xf32>
    %312 = arith.addf %310, %311 : vector<8x32xf32>
    %313 = math.tanh %312 : vector<8x32xf32>
    %314 = arith.mulf %309, %313 : vector<8x32xf32>
    %315 = arith.truncf %314 : vector<8x32xf32> to vector<8x32xbf16>
    %cst_54 = arith.constant dense<0.000000e+00> : vector<8x128xf32>
    %316 = tpu.matmul %315, %1, %cst_54 {dimension_numbers = #tpu.dot_dimension_numbers<[1], [0], [0], [1], [0, 0, 1, 1], [], []>} : vector<8x32xbf16>, vector<32x128xbf16>, vector<8x128xf32> -> vector<8x128xf32>
    %317 = arith.addf %7, %316 : vector<8x128xf32>
    %318 = arith.truncf %295 : vector<8x32xf32> to vector<8x32xbf16>
    %cst_55 = arith.constant dense<0.000000e+00> : vector<8x128xf32>
    %319 = tpu.matmul %318, %3, %cst_55 {dimension_numbers = #tpu.dot_dimension_numbers<[1], [0], [0], [1], [0, 0, 1, 1], [], []>} : vector<8x32xbf16>, vector<32x128xbf16>, vector<8x128xf32> -> vector<8x128xf32>
    %320 = arith.addf %317, %319 : vector<8x128xf32>
    %321 = arith.negf %320 : vector<8x128xf32>
    %322 = math.exp %321 : vector<8x128xf32>
    %cst_56 = arith.constant 1.000000e+00 : f32
    %323 = vector.broadcast %cst_56 : f32 to vector<8x128xf32>
    %324 = arith.addf %323, %322 : vector<8x128xf32>
    %325 = arith.divf %323, %324 : vector<8x128xf32>
    %326 = math.tanh %320 : vector<8x128xf32>
    %327 = vector.extract_strided_slice %325 {offsets = [0, 0], sizes = [8, 32], strides = [1, 1]} : vector<8x128xf32> to vector<8x32xf32>
    %328 = vector.extract_strided_slice %325 {offsets = [0, 32], sizes = [8, 32], strides = [1, 1]} : vector<8x128xf32> to vector<8x32xf32>
    %329 = vector.extract_strided_slice %326 {offsets = [0, 64], sizes = [8, 32], strides = [1, 1]} : vector<8x128xf32> to vector<8x32xf32>
    %330 = vector.extract_strided_slice %325 {offsets = [0, 96], sizes = [8, 32], strides = [1, 1]} : vector<8x128xf32> to vector<8x32xf32>
    %331 = arith.mulf %328, %293 : vector<8x32xf32>
    %332 = arith.mulf %327, %329 : vector<8x32xf32>
    %333 = arith.addf %331, %332 : vector<8x32xf32>
    %334 = math.tanh %333 : vector<8x32xf32>
    %335 = arith.mulf %330, %334 : vector<8x32xf32>
    %336 = arith.truncf %335 : vector<8x32xf32> to vector<8x32xbf16>
    %c0_57 = arith.constant 0 : index
    %c0_58 = arith.constant 0 : index
    %337 = vector.load %arg7[%c0_57, %c0_58] : memref<32x128xbf16, #tpu.memory_space<vmem>>, vector<32x128xbf16>
    %cst_59 = arith.constant dense<0.000000e+00> : vector<8x128xf32>
    %338 = tpu.matmul %336, %337, %cst_59 {dimension_numbers = #tpu.dot_dimension_numbers<[1], [0], [0], [1], [0, 0, 1, 1], [], []>} : vector<8x32xbf16>, vector<32x128xbf16>, vector<8x128xf32> -> vector<8x128xf32>
    %c0_60 = arith.constant 0 : index
    %c0_61 = arith.constant 0 : index
    %339 = vector.load %arg8[%c0_60, %c0_61] : memref<1x128xf32, #tpu.memory_space<vmem>>, vector<1x128xf32>
    %340 = vector.broadcast %339 : vector<1x128xf32> to vector<8x128xf32>
    %341 = arith.addf %338, %340 : vector<8x128xf32>
    %c0_62 = arith.constant 0 : index
    %c0_63 = arith.constant 0 : index
    %342 = vector.load %arg9[%c0_62, %c0_63] : memref<8x128xf32, #tpu.memory_space<vmem>>, vector<8x128xf32>
    tpu.vector_store %arg9[%c0_62, %c0_63], %341 {strides = array<i32>} : memref<8x128xf32, #tpu.memory_space<vmem>>, vector<8x128xf32>,
    return
  }
}

</mosaic_0001>

<llo_original>
// kernel: lstm_forward.1
$region0: #{lstm_forward.1}
  #allocation0 [shape = 'u32[]', space=smem, size = 0x4, offset = 0x4, fixed_abs, tag = 'smem constant byte address 0x4 - core index']
  #allocation1 [shape = 'u32[72,128]{1,0:T(1,128)}', space=vmem, size = 0x9000, scoped, tag = 'internal scratch']
  %s0 = inlined_call_operand.vmem [shape: bf16[64,16], index: 0, kind: input, shape index: {}]
  %s1 = inlined_call_operand.vmem [shape: bf16[16,128], index: 1, kind: input, shape index: {}]
  %s2 = inlined_call_operand.vmem [shape: bf16[32,128], index: 2, kind: input, shape index: {}]
  %s3 = inlined_call_operand.vmem [shape: f32[1,128], index: 3, kind: input, shape index: {}]
  %s4 = inlined_call_operand.vmem [shape: bf16[32,128], index: 4, kind: input, shape index: {}]
  %s5 = inlined_call_operand.vmem [shape: bf16[32,128], index: 5, kind: input, shape index: {}]
  %s6 = inlined_call_operand.vmem [shape: f32[1,128], index: 6, kind: input, shape index: {}]
  %s7 = inlined_call_operand.vmem [shape: bf16[32,128], index: 7, kind: input, shape index: {}]
  %s8 = inlined_call_operand.vmem [shape: f32[1,128], index: 8, kind: input, shape index: {}]
  %s9 = inlined_call_operand.vmem [shape: f32[8,128], index: 9, kind: output, shape index: {}]
  %s10 = sld [smem:[#allocation0]]
  $region46: #{lstm_forward.1} parent=0
    _
  %s12 = ssub.s32 1, %s10
  %s13 = scalar_select 0, %s12, %s10
  // Predicated region
  $region2: #{lstm_forward.1} parent=0 // pred_check
    _
  $region3: #{lstm_forward.1} parent=0 // pred_check_branch
    %15 = sbr.rel (0) target = $region5
  $region4: #{lstm_forward.1} parent=0 // pred_region
    _
  $region5: #{lstm_forward.1} parent=0 // pred_fallthru
    _
  // Predicated region
  $region6: #{lstm_forward.1} parent=0 // pred_check
    _
  $region7: #{lstm_forward.1} parent=0 // pred_check_branch
    %17 = sbr.rel (0) target = $region9
  $region8: #{lstm_forward.1} parent=0 // pred_region
    _
  $region9: #{lstm_forward.1} parent=0 // pred_fallthru
    _
  // Predicated region
  $region10: #{lstm_forward.1} parent=0 // pred_check
    _
  $region11: #{lstm_forward.1} parent=0 // pred_check_branch
    %19 = sbr.rel (0) target = $region13
  $region12: #{lstm_forward.1} parent=0 // pred_region
    _
  $region13: #{lstm_forward.1} parent=0 // pred_fallthru
    _
  // Predicated region
  $region14: #{lstm_forward.1} parent=0 // pred_check
    _
  $region15: #{lstm_forward.1} parent=0 // pred_check_branch
    %21 = sbr.rel (0) target = $region17
  $region16: #{lstm_forward.1} parent=0 // pred_region
    _
  $region17: #{lstm_forward.1} parent=0 // pred_fallthru
    _
  // Predicated region
  $region18: #{lstm_forward.1} parent=0 // pred_check
    _
  $region19: #{lstm_forward.1} parent=0 // pred_check_branch
    %23 = sbr.rel (0) target = $region21
  $region20: #{lstm_forward.1} parent=0 // pred_region
    _
  $region21: #{lstm_forward.1} parent=0 // pred_fallthru
    _
  // Predicated region
  $region22: #{lstm_forward.1} parent=0 // pred_check
    _
  $region23: #{lstm_forward.1} parent=0 // pred_check_branch
    %25 = sbr.rel (0) target = $region25
  $region24: #{lstm_forward.1} parent=0 // pred_region
    _
  $region25: #{lstm_forward.1} parent=0 // pred_fallthru
    _
  // Predicated region
  $region26: #{lstm_forward.1} parent=0 // pred_check
    _
  $region27: #{lstm_forward.1} parent=0 // pred_check_branch
    %27 = sbr.rel (0) target = $region29
  $region28: #{lstm_forward.1} parent=0 // pred_region
    _
  $region29: #{lstm_forward.1} parent=0 // pred_fallthru
    _
  // Predicated region
  $region30: #{lstm_forward.1} parent=0 // pred_check
    _
  $region31: #{lstm_forward.1} parent=0 // pred_check_branch
    %29 = sbr.rel (0) target = $region33
  $region32: #{lstm_forward.1} parent=0 // pred_region
    _
  $region33: #{lstm_forward.1} parent=0 // pred_fallthru
    _
  // Predicated region
  $region34: #{lstm_forward.1} parent=0 // pred_check
    _
  $region35: #{lstm_forward.1} parent=0 // pred_check_branch
    %31 = sbr.rel (0) target = $region37
  $region36: #{lstm_forward.1} parent=0 // pred_region
    _
  $region37: #{lstm_forward.1} parent=0 // pred_fallthru
    _
  %v33 = vld [vmem:[%s1] sm:$0xf]
  %v34 = vld [vmem:[%s1 + $0x4] sm:$0xf]
  %v35 = vld [vmem:[%s4] sm:$0xf]
  %v36 = vld [vmem:[%s4 + $0x4] sm:$0xf]
  %v37 = vld [vmem:[%s4 + $0x8] sm:$0xf]
  %v38 = vld [vmem:[%s4 + $0xc] sm:$0xf]
  %v39 = vld [vmem:[%s2] sm:$0xf]
  %v40 = vld [vmem:[%s2 + $0x4] sm:$0xf]
  %v41 = vld [vmem:[%s2 + $0x8] sm:$0xf]
  %v42 = vld [vmem:[%s2 + $0xc] sm:$0xf]
  %v43 = vld [vmem:[%s5] sm:$0xf]
  %v44 = vld [vmem:[%s5 + $0x4] sm:$0xf]
  %v45 = vld [vmem:[%s5 + $0x8] sm:$0xf]
  %v46 = vld [vmem:[%s5 + $0xc] sm:$0xf]
  %v47 = vld [vmem:[%s3] sm:$0x1]
  %v48 = vld [vmem:[%s6] sm:$0x1]
  %v50 = vperm.slane %v48, 0
  %v52 = vld [vmem:[%s0] sm:$0xf]
  %v53 = vld [vmem:[%s0 + $0x4] sm:$0xf]
  %v54 = vld [vmem:[%s0 + $0x8] sm:$0xf]
  %v55 = vld [vmem:[%s0 + $0xc] sm:$0xf]
  %v56 = vld [vmem:[%s0 + $0x10] sm:$0xf]
  %v57 = vld [vmem:[%s0 + $0x14] sm:$0xf]
  %v58 = vld [vmem:[%s0 + $0x18] sm:$0xf]
  %v59 = vld [vmem:[%s0 + $0x1c] sm:$0xf]
  %v61 = vperm.slane %v47, 0
  %v71 = vunpack.c.l.b16 %v52
  %v72 = vunpack.c.l.b16 %v53
  %v73 = vunpack.c.l.b16 %v54
  %v74 = vunpack.c.l.b16 %v55
  %v75 = vunpack.c.l.b16 %v56
  %v76 = vunpack.c.l.b16 %v57
  %v77 = vunpack.c.l.b16 %v58
  %v78 = vunpack.c.l.b16 %v59
  %v79 = vpack.c.b16 %v72, %v71
  %v80 = vpack.c.b16 %v74, %v73
  %v81 = vpack.c.b16 %v76, %v75
  %v82 = vpack.c.b16 %v78, %v77
  %v85 = vunpack.c.l.b16 %v33
  %v86 = vunpack.c.l.b16 %v34
  %v87 = vpack.c.b16 %v86, %v85
  %vm89 = vcmask 130048
  %v91 = vsel %vm89, %v79, 0
  %v94 = vsel %vm89, %v80, 0
  %v97 = vsel %vm89, %v81, 0
  %v100 = vsel %vm89, %v82, 0
  %102 = vmatpush.bf16.msra.mxu0 0
  %103 = vmatpush.bf16.msra.mxu0 0
  %104 = vmatpush.bf16.msra.mxu0 0
  %105 = vmatpush.bf16.msra.mxu0 0
  %106 = vmatpush.bf16.msra.mxu0 0
  %107 = vmatpush.bf16.msra.mxu0 0
  %108 = vmatpush.bf16.msra.mxu0 0
  %109 = vmatpush.bf16.msra.mxu0 %v87
  %110 = vmatmul.bf16.gmra.mxu0 %v91
  %v111 = vpop.f32.mrf.mxu0
  %v112 = vadd.f32 %v61, %v111
  %v113 = vpop.f32.mrf.mxu0
  %v114 = vadd.f32 %v61, %v113
  %115 = vmatmul.bf16.gmra.mxu0 %v94
  %v116 = vpop.f32.mrf.mxu0
  %v117 = vadd.f32 %v61, %v116
  %v118 = vpop.f32.mrf.mxu0
  %v119 = vadd.f32 %v61, %v118
  %120 = vmatmul.bf16.gmra.mxu0 %v97
  %v121 = vpop.f32.mrf.mxu0
  %v122 = vadd.f32 %v61, %v121
  %v123 = vpop.f32.mrf.mxu0
  %v124 = vadd.f32 %v61, %v123
  %125 = vmatmul.bf16.gmra.mxu0 %v100
  %v126 = vpop.f32.mrf.mxu0
  %v127 = vadd.f32 %v61, %v126
  %v128 = vpop.f32.mrf.mxu0
  %v129 = vadd.f32 %v61, %v128
  %130 = vdwg.mxu0
  %v135 = vunpack.c.l.b16 %v39
  %v136 = vunpack.c.l.b16 %v40
  %v137 = vunpack.c.l.b16 %v41
  %v138 = vunpack.c.l.b16 %v42
  %v139 = vpack.c.b16 %v136, %v135
  %v140 = vpack.c.b16 %v138, %v137
  %vm143 = vcmask 261120
  %v145 = vsel %vm143, 0, 0
  %147 = vmatpush.bf16.msra.mxu0 0
  %148 = vmatpush.bf16.msra.mxu0 0
  %149 = vmatpush.bf16.msra.mxu0 0
  %150 = vmatpush.bf16.msra.mxu0 0
  %151 = vmatpush.bf16.msra.mxu0 0
  %152 = vmatpush.bf16.msra.mxu0 0
  %153 = vmatpush.bf16.msra.mxu0 %v140
  %154 = vmatpush.bf16.msra.mxu0 %v139
  %155 = vmatmul.bf16.gmra.mxu0 %v145
  %v156 = vpop.f32.mrf.mxu0
  %v157 = vadd.f32 0.0, %v156
  %v158 = vpop.f32.mrf.mxu0
  %159 = vdwg.mxu0
  %v160 = vadd.f32 %v112, %v157
  %v161 = vxor.u32 %v160, 2147483648
  %v162 = vmul.f32 %v161, 1.442695
  %v163 = vpow.pop %v162
  %v164 = vadd.f32 %v163, 1.0
  %v165 = vrcp.pop %v164
  %v166 = vmul.f32 %v164, %v165
  %v167 = vsub.f32 1.0, %v166
  %v168 = vmul.f32 %v165, %v167
  %v169 = vadd.f32 %v165, %v168
  %vm170 = vweird.f32 %v164
  %vm171 = vweird.f32 %v165
  %vm172 = vmor %vm170, %vm171
  %v173 = vsel %vm172, %v165, %v169
  %v174 = vand.u32 2147483647, %v164
  %vm175 = vcmp.eq.f32.partialorder %v174, 8.507059e+37
  %v176 = vand.u32 %v164, 2147483648
  %v177 = vor.u32 1.1754944e-38, %v176
  %v178 = vsel %vm175, %v177, %v173
  %v179 = vmul.f32 1.0, %v178
  %v180 = vtanh.pop %v160
  %v181 = vmul.f32 %v179, 0.0
  %183 = vrot.lane.b32.xlu0 %v180, 64
  %v184 = vpop.permute.xlu0 %183
  %v186 = vmul.f32 %v179, %v184
  %188 = vrot.lane.b32.xlu0 %v186, 32
  %v189 = vpop.permute.xlu0 %188
  %v191 = vadd.f32 %v181, %v189
  %v192 = vtanh.pop %v191
  %194 = vrot.lane.b32.xlu0 %v192, 64
  %v195 = vpop.permute.xlu0 %194
  %v197 = vmul.f32 %v179, %v195
  %v198 = vpack.c.bf16 %v197, %v197
  %200 = vrot.lane.b32.xlu0 %v198, 32
  %v201 = vpop.permute.xlu0 %200
  %v206 = vunpack.c.l.b16 %v35
  %v207 = vunpack.c.l.b16 %v36
  %v208 = vunpack.c.l.b16 %v37
  %v209 = vunpack.c.l.b16 %v38
  %v210 = vpack.c.b16 %v207, %v206
  %v211 = vpack.c.b16 %v209, %v208
  %v215 = vsel %vm143, %v201, 0
  %217 = vmatpush.bf16.msra.mxu0 0
  %218 = vmatpush.bf16.msra.mxu0 0
  %219 = vmatpush.bf16.msra.mxu0 0
  %220 = vmatpush.bf16.msra.mxu0 0
  %221 = vmatpush.bf16.msra.mxu0 0
  %222 = vmatpush.bf16.msra.mxu0 0
  %223 = vmatpush.bf16.msra.mxu0 %v211
  %224 = vmatpush.bf16.msra.mxu0 %v210
  %225 = vmatmul.bf16.gmra.mxu0 %v215
  %v226 = vpop.f32.mrf.mxu0
  %v227 = vadd.f32 0.0, %v226
  %v228 = vpop.f32.mrf.mxu0
  %229 = vdwg.mxu0
  %v230 = vadd.f32 %v50, %v227
  %v235 = vunpack.c.l.b16 %v43
  %v236 = vunpack.c.l.b16 %v44
  %v237 = vunpack.c.l.b16 %v45
  %v238 = vunpack.c.l.b16 %v46
  %v239 = vpack.c.b16 %v236, %v235
  %v240 = vpack.c.b16 %v238, %v237
  %243 = vmatpush.bf16.msra.mxu0 0
  %244 = vmatpush.bf16.msra.mxu0 0
  %245 = vmatpush.bf16.msra.mxu0 0
  %246 = vmatpush.bf16.msra.mxu0 0
  %247 = vmatpush.bf16.msra.mxu0 0
  %248 = vmatpush.bf16.msra.mxu0 0
  %249 = vmatpush.bf16.msra.mxu0 %v240
  %250 = vmatpush.bf16.msra.mxu0 %v239
  %251 = vmatmul.bf16.gmra.mxu0 %v145
  %v252 = vpop.f32.mrf.mxu0
  %v253 = vadd.f32 0.0, %v252
  %v254 = vpop.f32.mrf.mxu0
  %255 = vdwg.mxu0
  %v256 = vadd.f32 %v230, %v253
  %v257 = vxor.u32 %v256, 2147483648
  %v258 = vmul.f32 %v257, 1.442695
  %v259 = vpow.pop %v258
  %v260 = vadd.f32 %v259, 1.0
  %v261 = vrcp.pop %v260
  %v262 = vmul.f32 %v260, %v261
  %v263 = vsub.f32 1.0, %v262
  %v264 = vmul.f32 %v261, %v263
  %v265 = vadd.f32 %v261, %v264
  %vm266 = vweird.f32 %v260
  %vm267 = vweird.f32 %v261
  %vm268 = vmor %vm266, %vm267
  %v269 = vsel %vm268, %v261, %v265
  %v270 = vand.u32 2147483647, %v260
  %vm271 = vcmp.eq.f32.partialorder %v270, 8.507059e+37
  %v272 = vand.u32 %v260, 2147483648
  %v273 = vor.u32 1.1754944e-38, %v272
  %v274 = vsel %vm271, %v273, %v269
  %v275 = vmul.f32 1.0, %v274
  %v276 = vtanh.pop %v256
  %v277 = vmul.f32 %v275, 0.0
  %279 = vrot.lane.b32.xlu0 %v276, 64
  %v280 = vpop.permute.xlu0 %279
  %v282 = vmul.f32 %v275, %v280
  %284 = vrot.lane.b32.xlu0 %v282, 32
  %v285 = vpop.permute.xlu0 %284
  %v287 = vadd.f32 %v277, %v285
  %v288 = vtanh.pop %v287
  %290 = vrot.lane.b32.xlu0 %v288, 64
  %v291 = vpop.permute.xlu0 %290
  %v293 = vmul.f32 %v275, %v291
  %294 = vmatpush.bf16.msra.mxu0 0
  %295 = vmatpush.bf16.msra.mxu0 0
  %296 = vmatpush.bf16.msra.mxu0 0
  %297 = vmatpush.bf16.msra.mxu0 0
  %298 = vmatpush.bf16.msra.mxu0 0
  %299 = vmatpush.bf16.msra.mxu0 0
  %300 = vmatpush.bf16.msra.mxu0 %v140
  %301 = vmatpush.bf16.msra.mxu0 %v139
  %302 = vmatmul.bf16.gmra.mxu0 %v215
  %v303 = vpop.f32.mrf.mxu0
  %v304 = vadd.f32 0.0, %v303
  %v305 = vpop.f32.mrf.mxu0
  %306 = vdwg.mxu0
  %v307 = vadd.f32 %v114, %v304
  %v308 = vxor.u32 %v307, 2147483648
  %v309 = vmul.f32 %v308, 1.442695
  %v310 = vpow.pop %v309
  %v311 = vadd.f32 %v310, 1.0
  %v312 = vrcp.pop %v311
  %v313 = vmul.f32 %v311, %v312
  %v314 = vsub.f32 1.0, %v313
  %v315 = vmul.f32 %v312, %v314
  %v316 = vadd.f32 %v312, %v315
  %vm317 = vweird.f32 %v311
  %vm318 = vweird.f32 %v312
  %vm319 = vmor %vm317, %vm318
  %v320 = vsel %vm319, %v312, %v316
  %v321 = vand.u32 2147483647, %v311
  %vm322 = vcmp.eq.f32.partialorder %v321, 8.507059e+37
  %v323 = vand.u32 %v311, 2147483648
  %v324 = vor.u32 1.1754944e-38, %v323
  %v325 = vsel %vm322, %v324, %v320
  %v326 = vmul.f32 1.0, %v325
  %v327 = vtanh.pop %v307
  %v328 = vmul.f32 %v326, %v191
  %330 = vrot.lane.b32.xlu0 %v327, 64
  %v331 = vpop.permute.xlu0 %330
  %v333 = vmul.f32 %v326, %v331
  %335 = vrot.lane.b32.xlu0 %v333, 32
  %v336 = vpop.permute.xlu0 %335
  %v338 = vadd.f32 %v328, %v336
  %v339 = vtanh.pop %v338
  %341 = vrot.lane.b32.xlu0 %v339, 64
  %v342 = vpop.permute.xlu0 %341
  %v344 = vmul.f32 %v326, %v342
  %v345 = vpack.c.bf16 %v344, %v344
  %347 = vrot.lane.b32.xlu0 %v345, 32
  %v348 = vpop.permute.xlu0 %347
  %v350 = vsel %vm143, %v348, 0
  %352 = vmatpush.bf16.msra.mxu0 0
  %353 = vmatpush.bf16.msra.mxu0 0
  %354 = vmatpush.bf16.msra.mxu0 0
  %355 = vmatpush.bf16.msra.mxu0 0
  %356 = vmatpush.bf16.msra.mxu0 0
  %357 = vmatpush.bf16.msra.mxu0 0
  %358 = vmatpush.bf16.msra.mxu0 %v211
  %359 = vmatpush.bf16.msra.mxu0 %v210
  %360 = vmatmul.bf16.gmra.mxu0 %v350
  %v361 = vpop.f32.mrf.mxu0
  %v362 = vadd.f32 0.0, %v361
  %v363 = vpop.f32.mrf.mxu0
  %364 = vdwg.mxu0
  %v365 = vadd.f32 %v50, %v362
  %v366 = vpack.c.bf16 %v293, %v293
  %368 = vrot.lane.b32.xlu0 %v366, 32
  %v369 = vpop.permute.xlu0 %368
  %v371 = vsel %vm143, %v369, 0
  %373 = vmatpush.bf16.msra.mxu0 0
  %374 = vmatpush.bf16.msra.mxu0 0
  %375 = vmatpush.bf16.msra.mxu0 0
  %376 = vmatpush.bf16.msra.mxu0 0
  %377 = vmatpush.bf16.msra.mxu0 0
  %378 = vmatpush.bf16.msra.mxu0 0
  %379 = vmatpush.bf16.msra.mxu0 %v240
  %380 = vmatpush.bf16.msra.mxu0 %v239
  %381 = vmatmul.bf16.gmra.mxu0 %v371
  %v382 = vpop.f32.mrf.mxu0
  %v383 = vadd.f32 0.0, %v382
  %v384 = vpop.f32.mrf.mxu0
  %385 = vdwg.mxu0
  %v386 = vadd.f32 %v365, %v383
  %v387 = vxor.u32 %v386, 2147483648
  %v388 = vmul.f32 %v387, 1.442695
  %v389 = vpow.pop %v388
  %v390 = vadd.f32 %v389, 1.0
  %v391 = vrcp.pop %v390
  %v392 = vmul.f32 %v390, %v391
  %v393 = vsub.f32 1.0, %v392
  %v394 = vmul.f32 %v391, %v393
  %v395 = vadd.f32 %v391, %v394
  %vm396 = vweird.f32 %v390
  %vm397 = vweird.f32 %v391
  %vm398 = vmor %vm396, %vm397
  %v399 = vsel %vm398, %v391, %v395
  %v400 = vand.u32 2147483647, %v390
  %vm401 = vcmp.eq.f32.partialorder %v400, 8.507059e+37
  %v402 = vand.u32 %v390, 2147483648
  %v403 = vor.u32 1.1754944e-38, %v402
  %v404 = vsel %vm401, %v403, %v399
  %v405 = vmul.f32 1.0, %v404
  %v406 = vtanh.pop %v386
  %v407 = vmul.f32 %v405, %v287
  %409 = vrot.lane.b32.xlu0 %v406, 64
  %v410 = vpop.permute.xlu0 %409
  %v412 = vmul.f32 %v405, %v410
  %414 = vrot.lane.b32.xlu0 %v412, 32
  %v415 = vpop.permute.xlu0 %414
  %v417 = vadd.f32 %v407, %v415
  %v418 = vtanh.pop %v417
  %420 = vrot.lane.b32.xlu0 %v418, 64
  %v421 = vpop.permute.xlu0 %420
  %v423 = vmul.f32 %v405, %v421
  %424 = vmatpush.bf16.msra.mxu0 0
  %425 = vmatpush.bf16.msra.mxu0 0
  %426 = vmatpush.bf16.msra.mxu0 0
  %427 = vmatpush.bf16.msra.mxu0 0
  %428 = vmatpush.bf16.msra.mxu0 0
  %429 = vmatpush.bf16.msra.mxu0 0
  %430 = vmatpush.bf16.msra.mxu0 %v140
  %431 = vmatpush.bf16.msra.mxu0 %v139
  %432 = vmatmul.bf16.gmra.mxu0 %v350
  %v433 = vpop.f32.mrf.mxu0
  %v434 = vadd.f32 0.0, %v433
  %v435 = vpop.f32.mrf.mxu0
  %436 = vdwg.mxu0
  %v437 = vadd.f32 %v117, %v434
  %v438 = vxor.u32 %v437, 2147483648
  %v439 = vmul.f32 %v438, 1.442695
  %v440 = vpow.pop %v439
  %v441 = vadd.f32 %v440, 1.0
  %v442 = vrcp.pop %v441
  %v443 = vmul.f32 %v441, %v442
  %v444 = vsub.f32 1.0, %v443
  %v445 = vmul.f32 %v442, %v444
  %v446 = vadd.f32 %v442, %v445
  %vm447 = vweird.f32 %v441
  %vm448 = vweird.f32 %v442
  %vm449 = vmor %vm447, %vm448
  %v450 = vsel %vm449, %v442, %v446
  %v451 = vand.u32 2147483647, %v441
  %vm452 = vcmp.eq.f32.partialorder %v451, 8.507059e+37
  %v453 = vand.u32 %v441, 2147483648
  %v454 = vor.u32 1.1754944e-38, %v453
  %v455 = vsel %vm452, %v454, %v450
  %v456 = vmul.f32 1.0, %v455
  %v457 = vtanh.pop %v437
  %v458 = vmul.f32 %v456, %v338
  %460 = vrot.lane.b32.xlu0 %v457, 64
  %v461 = vpop.permute.xlu0 %460
  %v463 = vmul.f32 %v456, %v461
  %465 = vrot.lane.b32.xlu0 %v463, 32
  %v466 = vpop.permute.xlu0 %465
  %v468 = vadd.f32 %v458, %v466
  %v469 = vtanh.pop %v468
  %471 = vrot.lane.b32.xlu0 %v469, 64
  %v472 = vpop.permute.xlu0 %471
  %v474 = vmul.f32 %v456, %v472
  %v475 = vpack.c.bf16 %v474, %v474
  %477 = vrot.lane.b32.xlu0 %v475, 32
  %v478 = vpop.permute.xlu0 %477
  %v480 = vsel %vm143, %v478, 0
  %482 = vmatpush.bf16.msra.mxu0 0
  %483 = vmatpush.bf16.msra.mxu0 0
  %484 = vmatpush.bf16.msra.mxu0 0
  %485 = vmatpush.bf16.msra.mxu0 0
  %486 = vmatpush.bf16.msra.mxu0 0
  %487 = vmatpush.bf16.msra.mxu0 0
  %488 = vmatpush.bf16.msra.mxu0 %v211
  %489 = vmatpush.bf16.msra.mxu0 %v210
  %490 = vmatmul.bf16.gmra.mxu0 %v480
  %v491 = vpop.f32.mrf.mxu0
  %v492 = vadd.f32 0.0, %v491
  %v493 = vpop.f32.mrf.mxu0
  %494 = vdwg.mxu0
  %v495 = vadd.f32 %v50, %v492
  %v496 = vpack.c.bf16 %v423, %v423
  %498 = vrot.lane.b32.xlu0 %v496, 32
  %v499 = vpop.permute.xlu0 %498
  %v501 = vsel %vm143, %v499, 0
  %503 = vmatpush.bf16.msra.mxu0 0
  %504 = vmatpush.bf16.msra.mxu0 0
  %505 = vmatpush.bf16.msra.mxu0 0
  %506 = vmatpush.bf16.msra.mxu0 0
  %507 = vmatpush.bf16.msra.mxu0 0
  %508 = vmatpush.bf16.msra.mxu0 0
  %509 = vmatpush.bf16.msra.mxu0 %v240
  %510 = vmatpush.bf16.msra.mxu0 %v239
  %511 = vmatmul.bf16.gmra.mxu0 %v501
  %v512 = vpop.f32.mrf.mxu0
  %v513 = vadd.f32 0.0, %v512
  %v514 = vpop.f32.mrf.mxu0
  %515 = vdwg.mxu0
  %v516 = vadd.f32 %v495, %v513
  %v517 = vxor.u32 %v516, 2147483648
  %v518 = vmul.f32 %v517, 1.442695
  %v519 = vpow.pop %v518
  %v520 = vadd.f32 %v519, 1.0
  %v521 = vrcp.pop %v520
  %v522 = vmul.f32 %v520, %v521
  %v523 = vsub.f32 1.0, %v522
  %v524 = vmul.f32 %v521, %v523
  %v525 = vadd.f32 %v521, %v524
  %vm526 = vweird.f32 %v520
  %vm527 = vweird.f32 %v521
  %vm528 = vmor %vm526, %vm527
  %v529 = vsel %vm528, %v521, %v525
  %v530 = vand.u32 2147483647, %v520
  %vm531 = vcmp.eq.f32.partialorder %v530, 8.507059e+37
  %v532 = vand.u32 %v520, 2147483648
  %v533 = vor.u32 1.1754944e-38, %v532
  %v534 = vsel %vm531, %v533, %v529
  %v535 = vmul.f32 1.0, %v534
  %v536 = vtanh.pop %v516
  %v537 = vmul.f32 %v535, %v417
  %539 = vrot.lane.b32.xlu0 %v536, 64
  %v540 = vpop.permute.xlu0 %539
  %v542 = vmul.f32 %v535, %v540
  %544 = vrot.lane.b32.xlu0 %v542, 32
  %v545 = vpop.permute.xlu0 %544
  %v547 = vadd.f32 %v537, %v545
  %v548 = vtanh.pop %v547
  %550 = vrot.lane.b32.xlu0 %v548, 64
  %v551 = vpop.permute.xlu0 %550
  %v553 = vmul.f32 %v535, %v551
  %554 = vmatpush.bf16.msra.mxu0 0
  %555 = vmatpush.bf16.msra.mxu0 0
  %556 = vmatpush.bf16.msra.mxu0 0
  %557 = vmatpush.bf16.msra.mxu0 0
  %558 = vmatpush.bf16.msra.mxu0 0
  %559 = vmatpush.bf16.msra.mxu0 0
  %560 = vmatpush.bf16.msra.mxu0 %v140
  %561 = vmatpush.bf16.msra.mxu0 %v139
  %562 = vmatmul.bf16.gmra.mxu0 %v480
  %v563 = vpop.f32.mrf.mxu0
  %v564 = vadd.f32 0.0, %v563
  %v565 = vpop.f32.mrf.mxu0
  %566 = vdwg.mxu0
  %v567 = vadd.f32 %v119, %v564
  %v568 = vxor.u32 %v567, 2147483648
  %v569 = vmul.f32 %v568, 1.442695
  %v570 = vpow.pop %v569
  %v571 = vadd.f32 %v570, 1.0
  %v572 = vrcp.pop %v571
  %v573 = vmul.f32 %v571, %v572
  %v574 = vsub.f32 1.0, %v573
  %v575 = vmul.f32 %v572, %v574
  %v576 = vadd.f32 %v572, %v575
  %vm577 = vweird.f32 %v571
  %vm578 = vweird.f32 %v572
  %vm579 = vmor %vm577, %vm578
  %v580 = vsel %vm579, %v572, %v576
  %v581 = vand.u32 2147483647, %v571
  %vm582 = vcmp.eq.f32.partialorder %v581, 8.507059e+37
  %v583 = vand.u32 %v571, 2147483648
  %v584 = vor.u32 1.1754944e-38, %v583
  %v585 = vsel %vm582, %v584, %v580
  %v586 = vmul.f32 1.0, %v585
  %v587 = vtanh.pop %v567
  %v588 = vmul.f32 %v586, %v468
  %590 = vrot.lane.b32.xlu0 %v587, 64
  %v591 = vpop.permute.xlu0 %590
  %v593 = vmul.f32 %v586, %v591
  %595 = vrot.lane.b32.xlu0 %v593, 32
  %v596 = vpop.permute.xlu0 %595
  %v598 = vadd.f32 %v588, %v596
  %v599 = vtanh.pop %v598
  %601 = vrot.lane.b32.xlu0 %v599, 64
  %v602 = vpop.permute.xlu0 %601
  %v604 = vmul.f32 %v586, %v602
  %v605 = vpack.c.bf16 %v604, %v604
  %607 = vrot.lane.b32.xlu0 %v605, 32
  %v608 = vpop.permute.xlu0 %607
  %v610 = vsel %vm143, %v608, 0
  %612 = vmatpush.bf16.msra.mxu0 0
  %613 = vmatpush.bf16.msra.mxu0 0
  %614 = vmatpush.bf16.msra.mxu0 0
  %615 = vmatpush.bf16.msra.mxu0 0
  %616 = vmatpush.bf16.msra.mxu0 0
  %617 = vmatpush.bf16.msra.mxu0 0
  %618 = vmatpush.bf16.msra.mxu0 %v211
  %619 = vmatpush.bf16.msra.mxu0 %v210
  %620 = vmatmul.bf16.gmra.mxu0 %v610
  %v621 = vpop.f32.mrf.mxu0
  %v622 = vadd.f32 0.0, %v621
  %v623 = vpop.f32.mrf.mxu0
  %624 = vdwg.mxu0
  %v625 = vadd.f32 %v50, %v622
  %v626 = vpack.c.bf16 %v553, %v553
  %628 = vrot.lane.b32.xlu0 %v626, 32
  %v629 = vpop.permute.xlu0 %628
  %v631 = vsel %vm143, %v629, 0
  %633 = vmatpush.bf16.msra.mxu0 0
  %634 = vmatpush.bf16.msra.mxu0 0
  %635 = vmatpush.bf16.msra.mxu0 0
  %636 = vmatpush.bf16.msra.mxu0 0
  %637 = vmatpush.bf16.msra.mxu0 0
  %638 = vmatpush.bf16.msra.mxu0 0
  %639 = vmatpush.bf16.msra.mxu0 %v240
  %640 = vmatpush.bf16.msra.mxu0 %v239
  %641 = vmatmul.bf16.gmra.mxu0 %v631
  %v642 = vpop.f32.mrf.mxu0
  %v643 = vadd.f32 0.0, %v642
  %v644 = vpop.f32.mrf.mxu0
  %645 = vdwg.mxu0
  %v646 = vadd.f32 %v625, %v643
  %v647 = vxor.u32 %v646, 2147483648
  %v648 = vmul.f32 %v647, 1.442695
  %v649 = vpow.pop %v648
  %v650 = vadd.f32 %v649, 1.0
  %v651 = vrcp.pop %v650
  %v652 = vmul.f32 %v650, %v651
  %v653 = vsub.f32 1.0, %v652
  %v654 = vmul.f32 %v651, %v653
  %v655 = vadd.f32 %v651, %v654
  %vm656 = vweird.f32 %v650
  %vm657 = vweird.f32 %v651
  %vm658 = vmor %vm656, %vm657
  %v659 = vsel %vm658, %v651, %v655
  %v660 = vand.u32 2147483647, %v650
  %vm661 = vcmp.eq.f32.partialorder %v660, 8.507059e+37
  %v662 = vand.u32 %v650, 2147483648
  %v663 = vor.u32 1.1754944e-38, %v662
  %v664 = vsel %vm661, %v663, %v659
  %v665 = vmul.f32 1.0, %v664
  %v666 = vtanh.pop %v646
  %v667 = vmul.f32 %v665, %v547
  %669 = vrot.lane.b32.xlu0 %v666, 64
  %v670 = vpop.permute.xlu0 %669
  %v672 = vmul.f32 %v665, %v670
  %674 = vrot.lane.b32.xlu0 %v672, 32
  %v675 = vpop.permute.xlu0 %674
  %v677 = vadd.f32 %v667, %v675
  %v678 = vtanh.pop %v677
  %680 = vrot.lane.b32.xlu0 %v678, 64
  %v681 = vpop.permute.xlu0 %680
  %v683 = vmul.f32 %v665, %v681
  %684 = vmatpush.bf16.msra.mxu0 0
  %685 = vmatpush.bf16.msra.mxu0 0
  %686 = vmatpush.bf16.msra.mxu0 0
  %687 = vmatpush.bf16.msra.mxu0 0
  %688 = vmatpush.bf16.msra.mxu0 0
  %689 = vmatpush.bf16.msra.mxu0 0
  %690 = vmatpush.bf16.msra.mxu0 %v140
  %691 = vmatpush.bf16.msra.mxu0 %v139
  %692 = vmatmul.bf16.gmra.mxu0 %v610
  %v693 = vpop.f32.mrf.mxu0
  %v694 = vadd.f32 0.0, %v693
  %v695 = vpop.f32.mrf.mxu0
  %696 = vdwg.mxu0
  %v697 = vadd.f32 %v122, %v694
  %v698 = vxor.u32 %v697, 2147483648
  %v699 = vmul.f32 %v698, 1.442695
  %v700 = vpow.pop %v699
  %v701 = vadd.f32 %v700, 1.0
  %v702 = vrcp.pop %v701
  %v703 = vmul.f32 %v701, %v702
  %v704 = vsub.f32 1.0, %v703
  %v705 = vmul.f32 %v702, %v704
  %v706 = vadd.f32 %v702, %v705
  %vm707 = vweird.f32 %v701
  %vm708 = vweird.f32 %v702
  %vm709 = vmor %vm707, %vm708
  %v710 = vsel %vm709, %v702, %v706
  %v711 = vand.u32 2147483647, %v701
  %vm712 = vcmp.eq.f32.partialorder %v711, 8.507059e+37
  %v713 = vand.u32 %v701, 2147483648
  %v714 = vor.u32 1.1754944e-38, %v713
  %v715 = vsel %vm712, %v714, %v710
  %v716 = vmul.f32 1.0, %v715
  %v717 = vtanh.pop %v697
  %v718 = vmul.f32 %v716, %v598
  %720 = vrot.lane.b32.xlu0 %v717, 64
  %v721 = vpop.permute.xlu0 %720
  %v723 = vmul.f32 %v716, %v721
  %725 = vrot.lane.b32.xlu0 %v723, 32
  %v726 = vpop.permute.xlu0 %725
  %v728 = vadd.f32 %v718, %v726
  %v729 = vtanh.pop %v728
  %731 = vrot.lane.b32.xlu0 %v729, 64
  %v732 = vpop.permute.xlu0 %731
  %v734 = vmul.f32 %v716, %v732
  %v735 = vpack.c.bf16 %v734, %v734
  %737 = vrot.lane.b32.xlu0 %v735, 32
  %v738 = vpop.permute.xlu0 %737
  %v740 = vsel %vm143, %v738, 0
  %742 = vmatpush.bf16.msra.mxu0 0
  %743 = vmatpush.bf16.msra.mxu0 0
  %744 = vmatpush.bf16.msra.mxu0 0
  %745 = vmatpush.bf16.msra.mxu0 0
  %746 = vmatpush.bf16.msra.mxu0 0
  %747 = vmatpush.bf16.msra.mxu0 0
  %748 = vmatpush.bf16.msra.mxu0 %v211
  %749 = vmatpush.bf16.msra.mxu0 %v210
  %750 = vmatmul.bf16.gmra.mxu0 %v740
  %v751 = vpop.f32.mrf.mxu0
  %v752 = vadd.f32 0.0, %v751
  %v753 = vpop.f32.mrf.mxu0
  %754 = vdwg.mxu0
  %v755 = vadd.f32 %v50, %v752
  %v756 = vpack.c.bf16 %v683, %v683
  %758 = vrot.lane.b32.xlu0 %v756, 32
  %v759 = vpop.permute.xlu0 %758
  %v761 = vsel %vm143, %v759, 0
  %763 = vmatpush.bf16.msra.mxu0 0
  %764 = vmatpush.bf16.msra.mxu0 0
  %765 = vmatpush.bf16.msra.mxu0 0
  %766 = vmatpush.bf16.msra.mxu0 0
  %767 = vmatpush.bf16.msra.mxu0 0
  %768 = vmatpush.bf16.msra.mxu0 0
  %769 = vmatpush.bf16.msra.mxu0 %v240
  %770 = vmatpush.bf16.msra.mxu0 %v239
  %771 = vmatmul.bf16.gmra.mxu0 %v761
  %v772 = vpop.f32.mrf.mxu0
  %v773 = vadd.f32 0.0, %v772
  %v774 = vpop.f32.mrf.mxu0
  %775 = vdwg.mxu0
  %v776 = vadd.f32 %v755, %v773
  %v777 = vxor.u32 %v776, 2147483648
  %v778 = vmul.f32 %v777, 1.442695
  %v779 = vpow.pop %v778
  %v780 = vadd.f32 %v779, 1.0
  %v781 = vrcp.pop %v780
  %v782 = vmul.f32 %v780, %v781
  %v783 = vsub.f32 1.0, %v782
  %v784 = vmul.f32 %v781, %v783
  %v785 = vadd.f32 %v781, %v784
  %vm786 = vweird.f32 %v780
  %vm787 = vweird.f32 %v781
  %vm788 = vmor %vm786, %vm787
  %v789 = vsel %vm788, %v781, %v785
  %v790 = vand.u32 2147483647, %v780
  %vm791 = vcmp.eq.f32.partialorder %v790, 8.507059e+37
  %v792 = vand.u32 %v780, 2147483648
  %v793 = vor.u32 1.1754944e-38, %v792
  %v794 = vsel %vm791, %v793, %v789
  %v795 = vmul.f32 1.0, %v794
  %v796 = vtanh.pop %v776
  %v797 = vmul.f32 %v795, %v677
  %799 = vrot.lane.b32.xlu0 %v796, 64
  %v800 = vpop.permute.xlu0 %799
  %v802 = vmul.f32 %v795, %v800
  %804 = vrot.lane.b32.xlu0 %v802, 32
  %v805 = vpop.permute.xlu0 %804
  %v807 = vadd.f32 %v797, %v805
  %v808 = vtanh.pop %v807
  %810 = vrot.lane.b32.xlu0 %v808, 64
  %v811 = vpop.permute.xlu0 %810
  %v813 = vmul.f32 %v795, %v811
  %814 = vmatpush.bf16.msra.mxu0 0
  %815 = vmatpush.bf16.msra.mxu0 0
  %816 = vmatpush.bf16.msra.mxu0 0
  %817 = vmatpush.bf16.msra.mxu0 0
  %818 = vmatpush.bf16.msra.mxu0 0
  %819 = vmatpush.bf16.msra.mxu0 0
  %820 = vmatpush.bf16.msra.mxu0 %v140
  %821 = vmatpush.bf16.msra.mxu0 %v139
  %822 = vmatmul.bf16.gmra.mxu0 %v740
  %v823 = vpop.f32.mrf.mxu0
  %v824 = vadd.f32 0.0, %v823
  %v825 = vpop.f32.mrf.mxu0
  %826 = vdwg.mxu0
  %v827 = vadd.f32 %v124, %v824
  %v828 = vxor.u32 %v827, 2147483648
  %v829 = vmul.f32 %v828, 1.442695
  %v830 = vpow.pop %v829
  %v831 = vadd.f32 %v830, 1.0
  %v832 = vrcp.pop %v831
  %v833 = vmul.f32 %v831, %v832
  %v834 = vsub.f32 1.0, %v833
  %v835 = vmul.f32 %v832, %v834
  %v836 = vadd.f32 %v832, %v835
  %vm837 = vweird.f32 %v831
  %vm838 = vweird.f32 %v832
  %vm839 = vmor %vm837, %vm838
  %v840 = vsel %vm839, %v832, %v836
  %v841 = vand.u32 2147483647, %v831
  %vm842 = vcmp.eq.f32.partialorder %v841, 8.507059e+37
  %v843 = vand.u32 %v831, 2147483648
  %v844 = vor.u32 1.1754944e-38, %v843
  %v845 = vsel %vm842, %v844, %v840
  %v846 = vmul.f32 1.0, %v845
  %v847 = vtanh.pop %v827
  %v848 = vmul.f32 %v846, %v728
  %850 = vrot.lane.b32.xlu0 %v847, 64
  %v851 = vpop.permute.xlu0 %850
  %v853 = vmul.f32 %v846, %v851
  %855 = vrot.lane.b32.xlu0 %v853, 32
  %v856 = vpop.permute.xlu0 %855
  %v858 = vadd.f32 %v848, %v856
  %v859 = vtanh.pop %v858
  %861 = vrot.lane.b32.xlu0 %v859, 64
  %v862 = vpop.permute.xlu0 %861
  %v864 = vmul.f32 %v846, %v862
  %v865 = vpack.c.bf16 %v864, %v864
  %867 = vrot.lane.b32.xlu0 %v865, 32
  %v868 = vpop.permute.xlu0 %867
  %v870 = vsel %vm143, %v868, 0
  %872 = vmatpush.bf16.msra.mxu0 0
  %873 = vmatpush.bf16.msra.mxu0 0
  %874 = vmatpush.bf16.msra.mxu0 0
  %875 = vmatpush.bf16.msra.mxu0 0
  %876 = vmatpush.bf16.msra.mxu0 0
  %877 = vmatpush.bf16.msra.mxu0 0
  %878 = vmatpush.bf16.msra.mxu0 %v211
  %879 = vmatpush.bf16.msra.mxu0 %v210
  %880 = vmatmul.bf16.gmra.mxu0 %v870
  %v881 = vpop.f32.mrf.mxu0
  %v882 = vadd.f32 0.0, %v881
  %v883 = vpop.f32.mrf.mxu0
  %884 = vdwg.mxu0
  %v885 = vadd.f32 %v50, %v882
  %v886 = vpack.c.bf16 %v813, %v813
  %888 = vrot.lane.b32.xlu0 %v886, 32
  %v889 = vpop.permute.xlu0 %888
  %v891 = vsel %vm143, %v889, 0
  %893 = vmatpush.bf16.msra.mxu0 0
  %894 = vmatpush.bf16.msra.mxu0 0
  %895 = vmatpush.bf16.msra.mxu0 0
  %896 = vmatpush.bf16.msra.mxu0 0
  %897 = vmatpush.bf16.msra.mxu0 0
  %898 = vmatpush.bf16.msra.mxu0 0
  %899 = vmatpush.bf16.msra.mxu0 %v240
  %900 = vmatpush.bf16.msra.mxu0 %v239
  %901 = vmatmul.bf16.gmra.mxu0 %v891
  %v902 = vpop.f32.mrf.mxu0
  %v903 = vadd.f32 0.0, %v902
  %v904 = vpop.f32.mrf.mxu0
  %905 = vdwg.mxu0
  %v906 = vadd.f32 %v885, %v903
  %v907 = vxor.u32 %v906, 2147483648
  %v908 = vmul.f32 %v907, 1.442695
  %v909 = vpow.pop %v908
  %v910 = vadd.f32 %v909, 1.0
  %v911 = vrcp.pop %v910
  %v912 = vmul.f32 %v910, %v911
  %v913 = vsub.f32 1.0, %v912
  %v914 = vmul.f32 %v911, %v913
  %v915 = vadd.f32 %v911, %v914
  %vm916 = vweird.f32 %v910
  %vm917 = vweird.f32 %v911
  %vm918 = vmor %vm916, %vm917
  %v919 = vsel %vm918, %v911, %v915
  %v920 = vand.u32 2147483647, %v910
  %vm921 = vcmp.eq.f32.partialorder %v920, 8.507059e+37
  %v922 = vand.u32 %v910, 2147483648
  %v923 = vor.u32 1.1754944e-38, %v922
  %v924 = vsel %vm921, %v923, %v919
  %v925 = vmul.f32 1.0, %v924
  %v926 = vtanh.pop %v906
  %v927 = vmul.f32 %v925, %v807
  %929 = vrot.lane.b32.xlu0 %v926, 64
  %v930 = vpop.permute.xlu0 %929
  %v932 = vmul.f32 %v925, %v930
  %934 = vrot.lane.b32.xlu0 %v932, 32
  %v935 = vpop.permute.xlu0 %934
  %v937 = vadd.f32 %v927, %v935
  %v938 = vtanh.pop %v937
  %940 = vrot.lane.b32.xlu0 %v938, 64
  %v941 = vpop.permute.xlu0 %940
  %v943 = vmul.f32 %v925, %v941
  %944 = vmatpush.bf16.msra.mxu0 0
  %945 = vmatpush.bf16.msra.mxu0 0
  %946 = vmatpush.bf16.msra.mxu0 0
  %947 = vmatpush.bf16.msra.mxu0 0
  %948 = vmatpush.bf16.msra.mxu0 0
  %949 = vmatpush.bf16.msra.mxu0 0
  %950 = vmatpush.bf16.msra.mxu0 %v140
  %951 = vmatpush.bf16.msra.mxu0 %v139
  %952 = vmatmul.bf16.gmra.mxu0 %v870
  %v953 = vpop.f32.mrf.mxu0
  %v954 = vadd.f32 0.0, %v953
  %v955 = vpop.f32.mrf.mxu0
  %956 = vdwg.mxu0
  %v957 = vadd.f32 %v127, %v954
  %v958 = vxor.u32 %v957, 2147483648
  %v959 = vmul.f32 %v958, 1.442695
  %v960 = vpow.pop %v959
  %v961 = vadd.f32 %v960, 1.0
  %v962 = vrcp.pop %v961
  %v963 = vmul.f32 %v961, %v962
  %v964 = vsub.f32 1.0, %v963
  %v965 = vmul.f32 %v962, %v964
  %v966 = vadd.f32 %v962, %v965
  %vm967 = vweird.f32 %v961
  %vm968 = vweird.f32 %v962
  %vm969 = vmor %vm967, %vm968
  %v970 = vsel %vm969, %v962, %v966
  %v971 = vand.u32 2147483647, %v961
  %vm972 = vcmp.eq.f32.partialorder %v971, 8.507059e+37
  %v973 = vand.u32 %v961, 2147483648
  %v974 = vor.u32 1.1754944e-38, %v973
  %v975 = vsel %vm972, %v974, %v970
  %v976 = vmul.f32 1.0, %v975
  %v977 = vtanh.pop %v957
  %v978 = vmul.f32 %v976, %v858
  %980 = vrot.lane.b32.xlu0 %v977, 64
  %v981 = vpop.permute.xlu0 %980
  %v983 = vmul.f32 %v976, %v981
  %985 = vrot.lane.b32.xlu0 %v983, 32
  %v986 = vpop.permute.xlu0 %985
  %v988 = vadd.f32 %v978, %v986
  %v989 = vtanh.pop %v988
  %991 = vrot.lane.b32.xlu0 %v989, 64
  %v992 = vpop.permute.xlu0 %991
  %v994 = vmul.f32 %v976, %v992
  %v995 = vpack.c.bf16 %v994, %v994
  %997 = vrot.lane.b32.xlu0 %v995, 32
  %v998 = vpop.permute.xlu0 %997
  %v1000 = vsel %vm143, %v998, 0
  %1002 = vmatpush.bf16.msra.mxu0 0
  %1003 = vmatpush.bf16.msra.mxu0 0
  %1004 = vmatpush.bf16.msra.mxu0 0
  %1005 = vmatpush.bf16.msra.mxu0 0
  %1006 = vmatpush.bf16.msra.mxu0 0
  %1007 = vmatpush.bf16.msra.mxu0 0
  %1008 = vmatpush.bf16.msra.mxu0 %v211
  %1009 = vmatpush.bf16.msra.mxu0 %v210
  %1010 = vmatmul.bf16.gmra.mxu0 %v1000
  %v1011 = vpop.f32.mrf.mxu0
  %v1012 = vadd.f32 0.0, %v1011
  %v1013 = vpop.f32.mrf.mxu0
  %1014 = vdwg.mxu0
  %v1015 = vadd.f32 %v50, %v1012
  %v1016 = vpack.c.bf16 %v943, %v943
  %1018 = vrot.lane.b32.xlu0 %v1016, 32
  %v1019 = vpop.permute.xlu0 %1018
  %v1021 = vsel %vm143, %v1019, 0
  %1023 = vmatpush.bf16.msra.mxu0 0
  %1024 = vmatpush.bf16.msra.mxu0 0
  %1025 = vmatpush.bf16.msra.mxu0 0
  %1026 = vmatpush.bf16.msra.mxu0 0
  %1027 = vmatpush.bf16.msra.mxu0 0
  %1028 = vmatpush.bf16.msra.mxu0 0
  %1029 = vmatpush.bf16.msra.mxu0 %v240
  %1030 = vmatpush.bf16.msra.mxu0 %v239
  %1031 = vmatmul.bf16.gmra.mxu0 %v1021
  %v1032 = vpop.f32.mrf.mxu0
  %v1033 = vadd.f32 0.0, %v1032
  %v1034 = vpop.f32.mrf.mxu0
  %1035 = vdwg.mxu0
  %v1036 = vadd.f32 %v1015, %v1033
  %v1037 = vxor.u32 %v1036, 2147483648
  %v1038 = vmul.f32 %v1037, 1.442695
  %v1039 = vpow.pop %v1038
  %v1040 = vadd.f32 %v1039, 1.0
  %v1041 = vrcp.pop %v1040
  %v1042 = vmul.f32 %v1040, %v1041
  %v1043 = vsub.f32 1.0, %v1042
  %v1044 = vmul.f32 %v1041, %v1043
  %v1045 = vadd.f32 %v1041, %v1044
  %vm1046 = vweird.f32 %v1040
  %vm1047 = vweird.f32 %v1041
  %vm1048 = vmor %vm1046, %vm1047
  %v1049 = vsel %vm1048, %v1041, %v1045
  %v1050 = vand.u32 2147483647, %v1040
  %vm1051 = vcmp.eq.f32.partialorder %v1050, 8.507059e+37
  %v1052 = vand.u32 %v1040, 2147483648
  %v1053 = vor.u32 1.1754944e-38, %v1052
  %v1054 = vsel %vm1051, %v1053, %v1049
  %v1055 = vmul.f32 1.0, %v1054
  %v1056 = vtanh.pop %v1036
  %v1057 = vmul.f32 %v1055, %v937
  %1059 = vrot.lane.b32.xlu0 %v1056, 64
  %v1060 = vpop.permute.xlu0 %1059
  %v1062 = vmul.f32 %v1055, %v1060
  %1064 = vrot.lane.b32.xlu0 %v1062, 32
  %v1065 = vpop.permute.xlu0 %1064
  %v1067 = vadd.f32 %v1057, %v1065
  %v1068 = vtanh.pop %v1067
  %1070 = vrot.lane.b32.xlu0 %v1068, 64
  %v1071 = vpop.permute.xlu0 %1070
  %v1073 = vmul.f32 %v1055, %v1071
  %1074 = vmatpush.bf16.msra.mxu0 0
  %1075 = vmatpush.bf16.msra.mxu0 0
  %1076 = vmatpush.bf16.msra.mxu0 0
  %1077 = vmatpush.bf16.msra.mxu0 0
  %1078 = vmatpush.bf16.msra.mxu0 0
  %1079 = vmatpush.bf16.msra.mxu0 0
  %1080 = vmatpush.bf16.msra.mxu0 %v140
  %1081 = vmatpush.bf16.msra.mxu0 %v139
  %1082 = vmatmul.bf16.gmra.mxu0 %v1000
  %v1083 = vpop.f32.mrf.mxu0
  %v1084 = vadd.f32 0.0, %v1083
  %v1085 = vpop.f32.mrf.mxu0
  %1086 = vdwg.mxu0
  %v1087 = vadd.f32 %v129, %v1084
  %v1088 = vxor.u32 %v1087, 2147483648
  %v1089 = vmul.f32 %v1088, 1.442695
  %v1090 = vpow.pop %v1089
  %v1091 = vadd.f32 %v1090, 1.0
  %v1092 = vrcp.pop %v1091
  %v1093 = vmul.f32 %v1091, %v1092
  %v1094 = vsub.f32 1.0, %v1093
  %v1095 = vmul.f32 %v1092, %v1094
  %v1096 = vadd.f32 %v1092, %v1095
  %vm1097 = vweird.f32 %v1091
  %vm1098 = vweird.f32 %v1092
  %vm1099 = vmor %vm1097, %vm1098
  %v1100 = vsel %vm1099, %v1092, %v1096
  %v1101 = vand.u32 2147483647, %v1091
  %vm1102 = vcmp.eq.f32.partialorder %v1101, 8.507059e+37
  %v1103 = vand.u32 %v1091, 2147483648
  %v1104 = vor.u32 1.1754944e-38, %v1103
  %v1105 = vsel %vm1102, %v1104, %v1100
  %v1106 = vmul.f32 1.0, %v1105
  %v1107 = vtanh.pop %v1087
  %v1108 = vmul.f32 %v1106, %v988
  %1110 = vrot.lane.b32.xlu0 %v1107, 64
  %v1111 = vpop.permute.xlu0 %1110
  %v1113 = vmul.f32 %v1106, %v1111
  %1115 = vrot.lane.b32.xlu0 %v1113, 32
  %v1116 = vpop.permute.xlu0 %1115
  %v1118 = vadd.f32 %v1108, %v1116
  %v1119 = vtanh.pop %v1118
  %1121 = vrot.lane.b32.xlu0 %v1119, 64
  %v1122 = vpop.permute.xlu0 %1121
  %v1124 = vmul.f32 %v1106, %v1122
  %v1125 = vpack.c.bf16 %v1124, %v1124
  %1127 = vrot.lane.b32.xlu0 %v1125, 32
  %v1128 = vpop.permute.xlu0 %1127
  %v1130 = vsel %vm143, %v1128, 0
  %1132 = vmatpush.bf16.msra.mxu0 0
  %1133 = vmatpush.bf16.msra.mxu0 0
  %1134 = vmatpush.bf16.msra.mxu0 0
  %1135 = vmatpush.bf16.msra.mxu0 0
  %1136 = vmatpush.bf16.msra.mxu0 0
  %1137 = vmatpush.bf16.msra.mxu0 0
  %1138 = vmatpush.bf16.msra.mxu0 %v211
  %1139 = vmatpush.bf16.msra.mxu0 %v210
  %1140 = vmatmul.bf16.gmra.mxu0 %v1130
  %v1141 = vpop.f32.mrf.mxu0
  %v1142 = vadd.f32 0.0, %v1141
  %v1143 = vpop.f32.mrf.mxu0
  %1144 = vdwg.mxu0
  %v1145 = vadd.f32 %v50, %v1142
  %v1146 = vpack.c.bf16 %v1073, %v1073
  %1148 = vrot.lane.b32.xlu0 %v1146, 32
  %v1149 = vpop.permute.xlu0 %1148
  %v1151 = vsel %vm143, %v1149, 0
  %1153 = vmatpush.bf16.msra.mxu0 0
  %1154 = vmatpush.bf16.msra.mxu0 0
  %1155 = vmatpush.bf16.msra.mxu0 0
  %1156 = vmatpush.bf16.msra.mxu0 0
  %1157 = vmatpush.bf16.msra.mxu0 0
  %1158 = vmatpush.bf16.msra.mxu0 0
  %1159 = vmatpush.bf16.msra.mxu0 %v240
  %1160 = vmatpush.bf16.msra.mxu0 %v239
  %1161 = vmatmul.bf16.gmra.mxu0 %v1151
  %v1162 = vpop.f32.mrf.mxu0
  %v1163 = vadd.f32 0.0, %v1162
  %v1164 = vpop.f32.mrf.mxu0
  %1165 = vdwg.mxu0
  %v1166 = vadd.f32 %v1145, %v1163
  %v1167 = vxor.u32 %v1166, 2147483648
  %v1168 = vmul.f32 %v1167, 1.442695
  %v1169 = vpow.pop %v1168
  %v1170 = vadd.f32 %v1169, 1.0
  %v1171 = vrcp.pop %v1170
  %v1172 = vmul.f32 %v1170, %v1171
  %v1173 = vsub.f32 1.0, %v1172
  %v1174 = vmul.f32 %v1171, %v1173
  %v1175 = vadd.f32 %v1171, %v1174
  %vm1176 = vweird.f32 %v1170
  %vm1177 = vweird.f32 %v1171
  %vm1178 = vmor %vm1176, %vm1177
  %v1179 = vsel %vm1178, %v1171, %v1175
  %v1180 = vand.u32 2147483647, %v1170
  %vm1181 = vcmp.eq.f32.partialorder %v1180, 8.507059e+37
  %v1182 = vand.u32 %v1170, 2147483648
  %v1183 = vor.u32 1.1754944e-38, %v1182
  %v1184 = vsel %vm1181, %v1183, %v1179
  %v1185 = vmul.f32 1.0, %v1184
  %v1186 = vtanh.pop %v1166
  %v1187 = vmul.f32 %v1185, %v1067
  %1189 = vrot.lane.b32.xlu0 %v1186, 64
  %v1190 = vpop.permute.xlu0 %1189
  %v1192 = vmul.f32 %v1185, %v1190
  %1194 = vrot.lane.b32.xlu0 %v1192, 32
  %v1195 = vpop.permute.xlu0 %1194
  %v1197 = vadd.f32 %v1187, %v1195
  %v1198 = vtanh.pop %v1197
  %1200 = vrot.lane.b32.xlu0 %v1198, 64
  %v1201 = vpop.permute.xlu0 %1200
  %v1203 = vmul.f32 %v1185, %v1201
  %v1204 = vpack.c.bf16 %v1203, %v1203
  %v1205 = vld [vmem:[%s7] sm:$0xf]
  %v1206 = vld [vmem:[%s7 + $0x4] sm:$0xf]
  %v1207 = vld [vmem:[%s7 + $0x8] sm:$0xf]
  %v1208 = vld [vmem:[%s7 + $0xc] sm:$0xf]
  %v1209 = vld [vmem:[%s8] sm:$0x1]
  %v1211 = vperm.slane %v1209, 0
  %1214 = vrot.lane.b32.xlu0 %v1204, 32
  %v1215 = vpop.permute.xlu0 %1214
  %v1220 = vunpack.c.l.b16 %v1205
  %v1221 = vunpack.c.l.b16 %v1206
  %v1222 = vunpack.c.l.b16 %v1207
  %v1223 = vunpack.c.l.b16 %v1208
  %v1224 = vpack.c.b16 %v1221, %v1220
  %v1225 = vpack.c.b16 %v1223, %v1222
  %v1229 = vsel %vm143, %v1215, 0
  %1231 = vmatpush.bf16.msra.mxu0 0
  %1232 = vmatpush.bf16.msra.mxu0 0
  %1233 = vmatpush.bf16.msra.mxu0 0
  %1234 = vmatpush.bf16.msra.mxu0 0
  %1235 = vmatpush.bf16.msra.mxu0 0
  %1236 = vmatpush.bf16.msra.mxu0 0
  %1237 = vmatpush.bf16.msra.mxu0 %v1225
  %1238 = vmatpush.bf16.msra.mxu0 %v1224
  %1239 = vmatmul.bf16.gmra.mxu0 %v1229
  %v1240 = vpop.f32.mrf.mxu0
  %v1241 = vadd.f32 %v1211, %v1240
  %v1242 = vpop.f32.mrf.mxu0
  %1243 = vdwg.mxu0
  %1244 = vst [vmem:[%s9] sm:$0xff] %v1241
  // Predicated region
  $region38: #{lstm_forward.1} parent=0 // pred_check
    _
  $region39: #{lstm_forward.1} parent=0 // pred_check_branch
    %1246 = sbr.rel (0) target = $region41
  $region40: #{lstm_forward.1} parent=0 // pred_region
    _
  $region41: #{lstm_forward.1} parent=0 // pred_fallthru
    _
  // Predicated region
  $region42: #{lstm_forward.1} parent=0 // pred_check
    _
  $region43: #{lstm_forward.1} parent=0 // pred_check_branch
    %1248 = sbr.rel (0) target = $region45
  $region44: #{lstm_forward.1} parent=0 // pred_region
    _
  $region45: #{lstm_forward.1} parent=0 // pred_fallthru
    _

</llo_original>
